<compile_context>
chip_gen: v7x
topology: tpu7x:2x2x1
jax: 0.10.0
libtpu: 0.0.40
codegen_flags: <defaults>
</compile_context>

<pallas_src>
import functools
import math

import jax
import jax.numpy as jnp
from jax import lax
from jax.experimental import pallas as pl
from jax.experimental.pallas import tpu as pltpu


def _cross_attention_kernel(x_ref, k_ref, v_ref, wq_ref, bq_ref, o_ref,
                            q_ref, p_ref, acc_ref, *, n_kv, dense_cols):
    """Grid: (batch, N-tile, kv-tile); the kv-tile axis is the reduction axis.

    x_ref : (1, TN, C)     bf16  query-side activations (tile of x)
    k_ref : (1, H, Tn, hd) bf16  keys of this kv-tile, per head
    v_ref : (1, H, hd, Tn) bf16  values of this kv-tile, per head (transposed)
    wq_ref: (C, C)         bf16  q weight, pre-scaled by 1/sqrt(C)
    bq_ref: (1, C)         f32   q bias,   pre-scaled by 1/sqrt(C)
    o_ref : (1, TN, C)           output tile
    q_ref : (TN, C)        bf16  persistent q projection (computed at j == 0)
    p_ref : (H, TN, Tn)    f32   logits, overwritten in place by exp(l - m)
    acc_ref: (TN, C) or (C, TN) f32  output accumulator over kv-tiles
    """
    H = k_ref.shape[1]
    Tn = k_ref.shape[2]
    hd = k_ref.shape[3]

    j = pl.program_id(2)
    last_j = pl.num_programs(2) - 1

    # ---- init (once per (batch, N-tile)): q projection + zero accumulator.
    @pl.when(j == 0)
    def _():
        q = jnp.dot(x_ref[0], wq_ref[...],
                    preferred_element_type=jnp.float32) + bq_ref[...]
        q_ref[...] = q.astype(jnp.bfloat16)
        acc_ref[...] = jnp.zeros_like(acc_ref)

    # Mask for a ragged last kv-tile (only generated when actually needed).
    kv_valid = None
    if n_kv % Tn:
        col = j * Tn + lax.broadcasted_iota(jnp.int32, (1, Tn), 1)
        kv_valid = col < n_kv                                   # (1, Tn)

    # ---- pass 1: per-head logits into the shared scratch + head-wise max.
    m = None
    for h in range(H):
        qh = q_ref[:, h * hd:(h + 1) * hd]                      # (TN, hd) bf16
        kh = k_ref[0, h]                                        # (Tn, hd) bf16
        lg = lax.dot_general(qh, kh, (((1,), (1,)), ((), ())),
                             preferred_element_type=jnp.float32)  # (TN, Tn)
        if kv_valid is not None:
            lg = jnp.where(kv_valid, lg, 0.0)
        p_ref[h] = lg
        m = lg if m is None else jnp.maximum(m, lg)

    # ---- pass 2: softmax over the HEAD axis (torch att.softmax(dim=1)),
    # exponentiating the scratch in place (logits and exps never coexist).
    denom = None
    for h in range(H):
        e = jnp.exp(p_ref[h] - m)
        p_ref[h] = e
        denom = e if denom is None else denom + e
    inv_denom = pl.reciprocal(denom, approx=False)              # exact; cheap

    # ---- pass 3: weighted value sum per head, accumulated over kv-tiles.
    for h in range(H):
        attn = p_ref[h] * inv_denom                             # (TN, Tn) f32
        if kv_valid is not None:
            attn = jnp.where(kv_valid, attn, 0.0)
        attn = attn.astype(jnp.bfloat16)
        vh = v_ref[0, h]                                        # (hd, Tn) bf16
        if dense_cols:
            # hd % 128 == 0: per-head lane slices are already lane-dense.
            oh = lax.dot_general(attn, vh, (((1,), (1,)), ((), ())),
                                 preferred_element_type=jnp.float32)  # (TN, hd)
            acc_ref[:, h * hd:(h + 1) * hd] += oh
        else:
            # Keep the accumulator transposed (C, TN): per-head updates are
            # sublane slices (dense for hd % 8 == 0) instead of masked
            # sub-128-lane stores.
            oh_t = lax.dot_general(vh, attn, (((1,), (1,)), ((), ())),
                                   preferred_element_type=jnp.float32)  # (hd, TN)
            acc_ref[h * hd:(h + 1) * hd, :] += oh_t

    # ---- finalize: a single lane-dense store of the (TN, C) output tile.
    @pl.when(j == last_j)
    def _():
        if dense_cols:
            o_ref[0] = acc_ref[...].astype(o_ref.dtype)
        else:
            o_ref[0] = acc_ref[...].T.astype(o_ref.dtype)


def _pick_tiling(N, n_kv, C, H):
    """Generation-aware tile sizes + VMEM limit (128-MiB chips vs 64-MiB v7x)."""
    vmem_cap = 64 * 1024 * 1024            # conservative fallback
    try:
        cap = getattr(pltpu.get_tpu_info(), "vmem_capacity_bytes", None)
        if cap:
            vmem_cap = int(cap)
    except Exception:
        pass

    if vmem_cap >= 100 * 1024 * 1024:      # v5e / v6e: 128 MiB VMEM
        tile_n, tile_kv, vmem_limit = 1024, 1024, 100 * 1024 * 1024
    else:                                  # v7x: 64 MiB VMEM
        tile_n, tile_kv, vmem_limit = 256, 512, 40 * 1024 * 1024

    TN = N if N <= tile_n else tile_n          # multiple of 8 when tiling
    Tn = n_kv if n_kv <= tile_kv else tile_kv  # multiple of 128 when tiling

    # Shrink TN until the dominant (H, TN, Tn) f32 logits/probs scratch fits
    # in ~1/3 of the limit (blocks, q and the accumulator need the rest).
    scratch_budget = vmem_limit // 3
    while H * TN * Tn * 4 > scratch_budget and TN >= 16:
        TN = max(8, ((TN // 2) + 7) // 8 * 8)
    return TN, Tn, vmem_limit


def cross_attention(x, f, w_t, bias, num_head, *, out_dtype=None):
    """Cross_Attention forward.

    x:    (B, N, C)  query-side input
    f:    (B, n, C)  key/value-side input
    w_t:  (C, 3C)    fused qkv weight, transposed (torch W.T)
    bias: (3C,)      fused qkv bias
    """
    B, N, C = x.shape
    Bf, n_kv, Cf = f.shape
    if Bf != B or Cf != C:
        raise ValueError("x and f must share batch and channel dimensions")
    if C % num_head:
        raise ValueError("dim must be divisible by num_head")
    hd = C // num_head
    out_dtype = x.dtype if out_dtype is None else out_dtype
    scale = 1.0 / math.sqrt(C)

    # ---- host-side prep ----------------------------------------------------
    # q weight/bias with the 1/sqrt(C) scale folded in; MXU operands in bf16.
    w_q = (w_t[:, :C] * scale).astype(jnp.bfloat16)              # (C, C)
    b_q = (bias[:C] * scale).astype(jnp.float32).reshape(1, C)   # (1, C)

    # k/v projection of f computed ONCE in XLA (not once per N-tile), split
    # per head; v is pre-transposed so the in-kernel PV matmul is NT-form.
    kv = jnp.einsum("bnc,cd->bnd", f.astype(jnp.float32),
                    w_t[:, C:].astype(jnp.float32)) + bias[C:]   # (B, n, 2C)
    k = kv[..., :C].reshape(B, n_kv, num_head, hd)
    v = kv[..., C:].reshape(B, n_kv, num_head, hd)
    k_heads = jnp.transpose(k, (0, 2, 1, 3)).astype(jnp.bfloat16)   # (B,H,n,hd)
    v_theads = jnp.transpose(v, (0, 2, 3, 1)).astype(jnp.bfloat16)  # (B,H,hd,n)
    xb = x.astype(jnp.bfloat16)

    # ---- generation-aware tiling --------------------------------------------
    TN, Tn, vmem_limit = _pick_tiling(N, n_kv, C, num_head)
    grid = (B, pl.cdiv(N, TN), pl.cdiv(n_kv, Tn))
    dense_cols = (hd % 128 == 0)
    acc_shape = (TN, C) if dense_cols else (C, TN)

    kernel = functools.partial(_cross_attention_kernel,
                               n_kv=n_kv, dense_cols=dense_cols)
    return pl.pallas_call(
        kernel,
        out_shape=jax.ShapeDtypeStruct((B, N, C), out_dtype),
        grid_spec=pltpu.PrefetchScalarGridSpec(
            num_scalar_prefetch=0,
            grid=grid,
            in_specs=[
                pl.BlockSpec((1, TN, C), lambda b, i, j: (b, i, 0)),       # x
                pl.BlockSpec((1, num_head, Tn, hd),
                             lambda b, i, j: (b, 0, j, 0)),                # k
                pl.BlockSpec((1, num_head, hd, Tn),
                             lambda b, i, j: (b, 0, 0, j)),                # v^T
                pl.BlockSpec((C, C), lambda b, i, j: (0, 0)),              # w_q
                pl.BlockSpec((1, C), lambda b, i, j: (0, 0)),              # b_q
            ],
            out_specs=pl.BlockSpec((1, TN, C), lambda b, i, j: (b, i, 0)),
            scratch_shapes=[
                pltpu.VMEM((TN, C), jnp.bfloat16),             # q (persists over j)
                pltpu.VMEM((num_head, TN, Tn), jnp.float32),   # logits / probs
                pltpu.VMEM(acc_shape, jnp.float32),            # output accumulator
            ]),
        compiler_params=pltpu.CompilerParams(
            dimension_semantics=("parallel", "parallel", "arbitrary"),
            vmem_limit_bytes=vmem_limit),
    )(xb, k_heads, v_theads, w_q, b_q)


def cross_attention_ref(x, f, w_t, bias, num_head):
    """Pure-JAX f32 reference mirroring the PyTorch forward exactly."""
    B, N, C = x.shape
    b, n, c = f.shape
    hd = C // num_head

    qkv_f = (f @ w_t + bias).reshape(b, n, 3, num_head, hd)
    qkv_f = jnp.transpose(qkv_f, (2, 0, 3, 1, 4))      # (3, b, H, n, hd)
    k, v = qkv_f[1], qkv_f[2]

    qkv_x = (x @ w_t + bias).reshape(B, N, 3, num_head, hd)
    qkv_x = jnp.transpose(qkv_x, (2, 0, 3, 1, 4))
    q = qkv_x[0]                                        # (B, H, N, hd)

    att = jnp.einsum('bhid,bhjd->bhij', q, k) / math.sqrt(C)
    att = jax.nn.softmax(att, axis=1)                   # softmax over heads!
    out = jnp.einsum('bhij,bhjd->bhid', att, v)         # (B, H, N, hd)
    out = jnp.transpose(out, (0, 2, 1, 3)).reshape(B, N, C)
    return out


if __name__ == "__main__":
    B, N, n, C, H = 2, 8, 8, 32, 4  # dim=32, num_head=4

    key = jax.random.PRNGKey(0)
    kx, kf, kw, kb = jax.random.split(key, 4)

    x = jax.random.normal(kx, (B, N, C), dtype=jnp.float32)
    f = jax.random.normal(kf, (B, n, C), dtype=jnp.float32)

    # Deterministic nn.Linear(dim, 3*dim) parameters (passed as W.T, (C, 3C)).
    bound = 1.0 / math.sqrt(C)
    w_t = jax.random.uniform(kw, (C, 3 * C), dtype=jnp.float32,
                             minval=-bound, maxval=bound)
    bias = jax.random.uniform(kb, (3 * C,), dtype=jnp.float32,
                              minval=-bound, maxval=bound)

    out = cross_attention(x, f, w_t, bias, H)
    out = jax.block_until_ready(out)

    ref = cross_attention_ref(x, f, w_t, bias, H)
    assert out.shape == (B, N, C)
    # Tolerance covers the bf16 MXU feeds (softmax itself is f32, exact recip).
    err = jnp.max(jnp.abs(out - ref))
    assert jnp.allclose(out, ref, atol=1e-2, rtol=1e-2), (
        f"mismatch vs reference, max err={err}")

    print("KERNEL_OK")
</pallas_src>

<mosaic_0001>
module attributes {stable_mosaic.version = 11 : i64} {
  func.func @_cross_attention_kernel(%arg0: i32, %arg1: i32, %arg2: i32, %arg3: memref<1x8x32xbf16, #tpu.memory_space<vmem>>, %arg4: memref<1x4x8x8xbf16, #tpu.memory_space<vmem>>, %arg5: memref<1x4x8x8xbf16, #tpu.memory_space<vmem>>, %arg6: memref<32x32xbf16, #tpu.memory_space<vmem>>, %arg7: memref<1x32xf32, #tpu.memory_space<vmem>>, %arg8: memref<1x8x32xf32, #tpu.memory_space<vmem>>, %arg9: memref<8x32xbf16, #tpu.memory_space<vmem>>, %arg10: memref<4x8x8xf32, #tpu.memory_space<vmem>>, %arg11: memref<32x8xf32, #tpu.memory_space<vmem>>) attributes {dimension_semantics = [#tpu.dimension_semantics<parallel>, #tpu.dimension_semantics<parallel>, #tpu.dimension_semantics<arbitrary>], iteration_bounds = array<i64: 2, 1, 1>, scalar_prefetch = 0 : i64, scratch_operands = 3 : i64, tpu.core_type = #tpu.core_type<tc>, window_params = [{transform_indices = @transform_0, window_bounds = array<i64: 1, 8, 32>}, {transform_indices = @transform_1, window_bounds = array<i64: 1, 4, 8, 8>}, {transform_indices = @transform_2, window_bounds = array<i64: 1, 4, 8, 8>}, {pipeline_mode = #tpu.pipeline_mode<synchronous>, transform_indices = @transform_3, window_bounds = array<i64: 32, 32>}, {pipeline_mode = #tpu.pipeline_mode<synchronous>, transform_indices = @transform_4, window_bounds = array<i64: 1, 32>}, {transform_indices = @transform_5, window_bounds = array<i64: 1, 8, 32>}]} {
    %c0_i32 = arith.constant 0 : i32
    %0 = arith.cmpi eq, %arg2, %c0_i32 : i32
    %1 = arith.extui %0 : i1 to i32
    %c0_i32_0 = arith.constant 0 : i32
    %2 = arith.cmpi ne, %1, %c0_i32_0 : i32
    scf.if %2 {
      %c0_107 = arith.constant 0 : index
      %c0_108 = arith.constant 0 : index
      %c0_109 = arith.constant 0 : index
      %109 = vector.load %arg3[%c0_107, %c0_108, %c0_109] : memref<1x8x32xbf16, #tpu.memory_space<vmem>>, vector<1x8x32xbf16>
      %110 = vector.shape_cast %109 : vector<1x8x32xbf16> to vector<8x32xbf16>
      %c0_110 = arith.constant 0 : index
      %c0_111 = arith.constant 0 : index
      %111 = vector.load %arg6[%c0_110, %c0_111] : memref<32x32xbf16, #tpu.memory_space<vmem>>, vector<32x32xbf16>
      %cst_112 = arith.constant dense<0.000000e+00> : vector<8x32xf32>
      %112 = tpu.matmul %110, %111, %cst_112 {dimension_numbers = #tpu.dot_dimension_numbers<[1], [0], [0], [1], [0, 0, 1, 1], [], []>} : vector<8x32xbf16>, vector<32x32xbf16>, vector<8x32xf32> -> vector<8x32xf32>
      %c0_113 = arith.constant 0 : index
      %c0_114 = arith.constant 0 : index
      %113 = vector.load %arg7[%c0_113, %c0_114] : memref<1x32xf32, #tpu.memory_space<vmem>>, vector<1x32xf32>
      %114 = vector.broadcast %113 : vector<1x32xf32> to vector<8x32xf32>
      %115 = arith.addf %112, %114 : vector<8x32xf32>
      %116 = arith.truncf %115 : vector<8x32xf32> to vector<8x32xbf16>
      %c0_115 = arith.constant 0 : index
      %c0_116 = arith.constant 0 : index
      %117 = vector.load %arg9[%c0_115, %c0_116] : memref<8x32xbf16, #tpu.memory_space<vmem>>, vector<8x32xbf16>
      tpu.vector_store %arg9[%c0_115, %c0_116], %116 {strides = array<i32>} : memref<8x32xbf16, #tpu.memory_space<vmem>>, vector<8x32xbf16>,
      %cst_117 = arith.constant 0.000000e+00 : f32
      %118 = vector.broadcast %cst_117 : f32 to vector<32x8xf32>
      %c0_118 = arith.constant 0 : index
      %c0_119 = arith.constant 0 : index
      %119 = vector.load %arg11[%c0_118, %c0_119] : memref<32x8xf32, #tpu.memory_space<vmem>>, vector<32x8xf32>
      tpu.vector_store %arg11[%c0_118, %c0_119], %118 {strides = array<i32>} : memref<32x8xf32, #tpu.memory_space<vmem>>, vector<32x8xf32>,
    } else {
    }
    %c0 = arith.constant 0 : index
    %c0_1 = arith.constant 0 : index
    %3 = vector.load %arg9[%c0, %c0_1] : memref<8x32xbf16, #tpu.memory_space<vmem>>, vector<8x8xbf16>
    %c0_2 = arith.constant 0 : index
    %c0_3 = arith.constant 0 : index
    %c0_4 = arith.constant 0 : index
    %c0_5 = arith.constant 0 : index
    %4 = vector.load %arg4[%c0_2, %c0_3, %c0_4, %c0_5] : memref<1x4x8x8xbf16, #tpu.memory_space<vmem>>, vector<1x1x8x8xbf16>
    %5 = vector.shape_cast %4 : vector<1x1x8x8xbf16> to vector<8x8xbf16>
    %cst = arith.constant dense<0.000000e+00> : vector<8x8xf32>
    %6 = tpu.matmul %3, %5, %cst {dimension_numbers = #tpu.dot_dimension_numbers<[1], [1], [0], [0], [0, 0, 1, 0], [], []>} : vector<8x8xbf16>, vector<8x8xbf16>, vector<8x8xf32> -> vector<8x8xf32>
    %c0_6 = arith.constant 0 : index
    %c0_7 = arith.constant 0 : index
    %c0_8 = arith.constant 0 : index
    %7 = vector.load %arg10[%c0_6, %c0_7, %c0_8] : memref<4x8x8xf32, #tpu.memory_space<vmem>>, vector<1x8x8xf32>
    %8 = vector.shape_cast %7 : vector<1x8x8xf32> to vector<8x8xf32>
    %9 = vector.shape_cast %6 : vector<8x8xf32> to vector<1x8x8xf32>
    tpu.vector_store %arg10[%c0_6, %c0_7, %c0_8], %9 {strides = array<i32>} : memref<4x8x8xf32, #tpu.memory_space<vmem>>, vector<1x8x8xf32>,
    %c0_9 = arith.constant 0 : index
    %c8 = arith.constant 8 : index
    %10 = vector.load %arg9[%c0_9, %c8] : memref<8x32xbf16, #tpu.memory_space<vmem>>, vector<8x8xbf16>
    %c0_10 = arith.constant 0 : index
    %c1 = arith.constant 1 : index
    %c0_11 = arith.constant 0 : index
    %c0_12 = arith.constant 0 : index
    %11 = vector.load %arg4[%c0_10, %c1, %c0_11, %c0_12] : memref<1x4x8x8xbf16, #tpu.memory_space<vmem>>, vector<1x1x8x8xbf16>
    %12 = vector.shape_cast %11 : vector<1x1x8x8xbf16> to vector<8x8xbf16>
    %cst_13 = arith.constant dense<0.000000e+00> : vector<8x8xf32>
    %13 = tpu.matmul %10, %12, %cst_13 {dimension_numbers = #tpu.dot_dimension_numbers<[1], [1], [0], [0], [0, 0, 1, 0], [], []>} : vector<8x8xbf16>, vector<8x8xbf16>, vector<8x8xf32> -> vector<8x8xf32>
    %c1_14 = arith.constant 1 : index
    %c0_15 = arith.constant 0 : index
    %c0_16 = arith.constant 0 : index
    %14 = vector.load %arg10[%c1_14, %c0_15, %c0_16] : memref<4x8x8xf32, #tpu.memory_space<vmem>>, vector<1x8x8xf32>
    %15 = vector.shape_cast %14 : vector<1x8x8xf32> to vector<8x8xf32>
    %16 = vector.shape_cast %13 : vector<8x8xf32> to vector<1x8x8xf32>
    tpu.vector_store %arg10[%c1_14, %c0_15, %c0_16], %16 {strides = array<i32>} : memref<4x8x8xf32, #tpu.memory_space<vmem>>, vector<1x8x8xf32>,
    %17 = arith.maximumf %6, %13 : vector<8x8xf32>
    %c0_17 = arith.constant 0 : index
    %c16 = arith.constant 16 : index
    %18 = vector.load %arg9[%c0_17, %c16] : memref<8x32xbf16, #tpu.memory_space<vmem>>, vector<8x8xbf16>
    %c0_18 = arith.constant 0 : index
    %c2 = arith.constant 2 : index
    %c0_19 = arith.constant 0 : index
    %c0_20 = arith.constant 0 : index
    %19 = vector.load %arg4[%c0_18, %c2, %c0_19, %c0_20] : memref<1x4x8x8xbf16, #tpu.memory_space<vmem>>, vector<1x1x8x8xbf16>
    %20 = vector.shape_cast %19 : vector<1x1x8x8xbf16> to vector<8x8xbf16>
    %cst_21 = arith.constant dense<0.000000e+00> : vector<8x8xf32>
    %21 = tpu.matmul %18, %20, %cst_21 {dimension_numbers = #tpu.dot_dimension_numbers<[1], [1], [0], [0], [0, 0, 1, 0], [], []>} : vector<8x8xbf16>, vector<8x8xbf16>, vector<8x8xf32> -> vector<8x8xf32>
    %c2_22 = arith.constant 2 : index
    %c0_23 = arith.constant 0 : index
    %c0_24 = arith.constant 0 : index
    %22 = vector.load %arg10[%c2_22, %c0_23, %c0_24] : memref<4x8x8xf32, #tpu.memory_space<vmem>>, vector<1x8x8xf32>
    %23 = vector.shape_cast %22 : vector<1x8x8xf32> to vector<8x8xf32>
    %24 = vector.shape_cast %21 : vector<8x8xf32> to vector<1x8x8xf32>
    tpu.vector_store %arg10[%c2_22, %c0_23, %c0_24], %24 {strides = array<i32>} : memref<4x8x8xf32, #tpu.memory_space<vmem>>, vector<1x8x8xf32>,
    %25 = arith.maximumf %17, %21 : vector<8x8xf32>
    %c0_25 = arith.constant 0 : index
    %c24 = arith.constant 24 : index
    %26 = vector.load %arg9[%c0_25, %c24] : memref<8x32xbf16, #tpu.memory_space<vmem>>, vector<8x8xbf16>
    %c0_26 = arith.constant 0 : index
    %c3 = arith.constant 3 : index
    %c0_27 = arith.constant 0 : index
    %c0_28 = arith.constant 0 : index
    %27 = vector.load %arg4[%c0_26, %c3, %c0_27, %c0_28] : memref<1x4x8x8xbf16, #tpu.memory_space<vmem>>, vector<1x1x8x8xbf16>
    %28 = vector.shape_cast %27 : vector<1x1x8x8xbf16> to vector<8x8xbf16>
    %cst_29 = arith.constant dense<0.000000e+00> : vector<8x8xf32>
    %29 = tpu.matmul %26, %28, %cst_29 {dimension_numbers = #tpu.dot_dimension_numbers<[1], [1], [0], [0], [0, 0, 1, 0], [], []>} : vector<8x8xbf16>, vector<8x8xbf16>, vector<8x8xf32> -> vector<8x8xf32>
    %c3_30 = arith.constant 3 : index
    %c0_31 = arith.constant 0 : index
    %c0_32 = arith.constant 0 : index
    %30 = vector.load %arg10[%c3_30, %c0_31, %c0_32] : memref<4x8x8xf32, #tpu.memory_space<vmem>>, vector<1x8x8xf32>
    %31 = vector.shape_cast %30 : vector<1x8x8xf32> to vector<8x8xf32>
    %32 = vector.shape_cast %29 : vector<8x8xf32> to vector<1x8x8xf32>
    tpu.vector_store %arg10[%c3_30, %c0_31, %c0_32], %32 {strides = array<i32>} : memref<4x8x8xf32, #tpu.memory_space<vmem>>, vector<1x8x8xf32>,
    %33 = arith.maximumf %25, %29 : vector<8x8xf32>
    %c0_33 = arith.constant 0 : index
    %c0_34 = arith.constant 0 : index
    %c0_35 = arith.constant 0 : index
    %34 = vector.load %arg10[%c0_33, %c0_34, %c0_35] : memref<4x8x8xf32, #tpu.memory_space<vmem>>, vector<1x8x8xf32>
    %35 = vector.shape_cast %34 : vector<1x8x8xf32> to vector<8x8xf32>
    %36 = arith.subf %35, %33 : vector<8x8xf32>
    %37 = math.exp %36 : vector<8x8xf32>
    %c0_36 = arith.constant 0 : index
    %c0_37 = arith.constant 0 : index
    %c0_38 = arith.constant 0 : index
    %38 = vector.load %arg10[%c0_36, %c0_37, %c0_38] : memref<4x8x8xf32, #tpu.memory_space<vmem>>, vector<1x8x8xf32>
    %39 = vector.shape_cast %38 : vector<1x8x8xf32> to vector<8x8xf32>
    %40 = vector.shape_cast %37 : vector<8x8xf32> to vector<1x8x8xf32>
    tpu.vector_store %arg10[%c0_36, %c0_37, %c0_38], %40 {strides = array<i32>} : memref<4x8x8xf32, #tpu.memory_space<vmem>>, vector<1x8x8xf32>,
    %c1_39 = arith.constant 1 : index
    %c0_40 = arith.constant 0 : index
    %c0_41 = arith.constant 0 : index
    %41 = vector.load %arg10[%c1_39, %c0_40, %c0_41] : memref<4x8x8xf32, #tpu.memory_space<vmem>>, vector<1x8x8xf32>
    %42 = vector.shape_cast %41 : vector<1x8x8xf32> to vector<8x8xf32>
    %43 = arith.subf %42, %33 : vector<8x8xf32>
    %44 = math.exp %43 : vector<8x8xf32>
    %c1_42 = arith.constant 1 : index
    %c0_43 = arith.constant 0 : index
    %c0_44 = arith.constant 0 : index
    %45 = vector.load %arg10[%c1_42, %c0_43, %c0_44] : memref<4x8x8xf32, #tpu.memory_space<vmem>>, vector<1x8x8xf32>
    %46 = vector.shape_cast %45 : vector<1x8x8xf32> to vector<8x8xf32>
    %47 = vector.shape_cast %44 : vector<8x8xf32> to vector<1x8x8xf32>
    tpu.vector_store %arg10[%c1_42, %c0_43, %c0_44], %47 {strides = array<i32>} : memref<4x8x8xf32, #tpu.memory_space<vmem>>, vector<1x8x8xf32>,
    %48 = arith.addf %37, %44 : vector<8x8xf32>
    %c2_45 = arith.constant 2 : index
    %c0_46 = arith.constant 0 : index
    %c0_47 = arith.constant 0 : index
    %49 = vector.load %arg10[%c2_45, %c0_46, %c0_47] : memref<4x8x8xf32, #tpu.memory_space<vmem>>, vector<1x8x8xf32>
    %50 = vector.shape_cast %49 : vector<1x8x8xf32> to vector<8x8xf32>
    %51 = arith.subf %50, %33 : vector<8x8xf32>
    %52 = math.exp %51 : vector<8x8xf32>
    %c2_48 = arith.constant 2 : index
    %c0_49 = arith.constant 0 : index
    %c0_50 = arith.constant 0 : index
    %53 = vector.load %arg10[%c2_48, %c0_49, %c0_50] : memref<4x8x8xf32, #tpu.memory_space<vmem>>, vector<1x8x8xf32>
    %54 = vector.shape_cast %53 : vector<1x8x8xf32> to vector<8x8xf32>
    %55 = vector.shape_cast %52 : vector<8x8xf32> to vector<1x8x8xf32>
    tpu.vector_store %arg10[%c2_48, %c0_49, %c0_50], %55 {strides = array<i32>} : memref<4x8x8xf32, #tpu.memory_space<vmem>>, vector<1x8x8xf32>,
    %56 = arith.addf %48, %52 : vector<8x8xf32>
    %c3_51 = arith.constant 3 : index
    %c0_52 = arith.constant 0 : index
    %c0_53 = arith.constant 0 : index
    %57 = vector.load %arg10[%c3_51, %c0_52, %c0_53] : memref<4x8x8xf32, #tpu.memory_space<vmem>>, vector<1x8x8xf32>
    %58 = vector.shape_cast %57 : vector<1x8x8xf32> to vector<8x8xf32>
    %59 = arith.subf %58, %33 : vector<8x8xf32>
    %60 = math.exp %59 : vector<8x8xf32>
    %c3_54 = arith.constant 3 : index
    %c0_55 = arith.constant 0 : index
    %c0_56 = arith.constant 0 : index
    %61 = vector.load %arg10[%c3_54, %c0_55, %c0_56] : memref<4x8x8xf32, #tpu.memory_space<vmem>>, vector<1x8x8xf32>
    %62 = vector.shape_cast %61 : vector<1x8x8xf32> to vector<8x8xf32>
    %63 = vector.shape_cast %60 : vector<8x8xf32> to vector<1x8x8xf32>
    tpu.vector_store %arg10[%c3_54, %c0_55, %c0_56], %63 {strides = array<i32>} : memref<4x8x8xf32, #tpu.memory_space<vmem>>, vector<1x8x8xf32>,
    %64 = arith.addf %56, %60 : vector<8x8xf32>
    %65 = tpu.reciprocal %64 : vector<8x8xf32> -> vector<8x8xf32>
    %c0_57 = arith.constant 0 : index
    %c0_58 = arith.constant 0 : index
    %c0_59 = arith.constant 0 : index
    %66 = vector.load %arg10[%c0_57, %c0_58, %c0_59] : memref<4x8x8xf32, #tpu.memory_space<vmem>>, vector<1x8x8xf32>
    %67 = vector.shape_cast %66 : vector<1x8x8xf32> to vector<8x8xf32>
    %68 = arith.mulf %67, %65 : vector<8x8xf32>
    %69 = arith.truncf %68 : vector<8x8xf32> to vector<8x8xbf16>
    %c0_60 = arith.constant 0 : index
    %c0_61 = arith.constant 0 : index
    %c0_62 = arith.constant 0 : index
    %c0_63 = arith.constant 0 : index
    %70 = vector.load %arg5[%c0_60, %c0_61, %c0_62, %c0_63] : memref<1x4x8x8xbf16, #tpu.memory_space<vmem>>, vector<1x1x8x8xbf16>
    %71 = vector.shape_cast %70 : vector<1x1x8x8xbf16> to vector<8x8xbf16>
    %cst_64 = arith.constant dense<0.000000e+00> : vector<8x8xf32>
    %72 = tpu.matmul %71, %69, %cst_64 {dimension_numbers = #tpu.dot_dimension_numbers<[1], [1], [0], [0], [0, 0, 1, 0], [], []>} : vector<8x8xbf16>, vector<8x8xbf16>, vector<8x8xf32> -> vector<8x8xf32>
    %c0_65 = arith.constant 0 : index
    %c0_66 = arith.constant 0 : index
    %73 = vector.load %arg11[%c0_65, %c0_66] : memref<32x8xf32, #tpu.memory_space<vmem>>, vector<8x8xf32>
    %74 = arith.addf %73, %72 : vector<8x8xf32>
    %c0_67 = arith.constant 0 : index
    %c0_68 = arith.constant 0 : index
    %75 = vector.load %arg11[%c0_67, %c0_68] : memref<32x8xf32, #tpu.memory_space<vmem>>, vector<8x8xf32>
    tpu.vector_store %arg11[%c0_67, %c0_68], %74 {strides = array<i32>} : memref<32x8xf32, #tpu.memory_space<vmem>>, vector<8x8xf32>,
    %c1_69 = arith.constant 1 : index
    %c0_70 = arith.constant 0 : index
    %c0_71 = arith.constant 0 : index
    %76 = vector.load %arg10[%c1_69, %c0_70, %c0_71] : memref<4x8x8xf32, #tpu.memory_space<vmem>>, vector<1x8x8xf32>
    %77 = vector.shape_cast %76 : vector<1x8x8xf32> to vector<8x8xf32>
    %78 = arith.mulf %77, %65 : vector<8x8xf32>
    %79 = arith.truncf %78 : vector<8x8xf32> to vector<8x8xbf16>
    %c0_72 = arith.constant 0 : index
    %c1_73 = arith.constant 1 : index
    %c0_74 = arith.constant 0 : index
    %c0_75 = arith.constant 0 : index
    %80 = vector.load %arg5[%c0_72, %c1_73, %c0_74, %c0_75] : memref<1x4x8x8xbf16, #tpu.memory_space<vmem>>, vector<1x1x8x8xbf16>
    %81 = vector.shape_cast %80 : vector<1x1x8x8xbf16> to vector<8x8xbf16>
    %cst_76 = arith.constant dense<0.000000e+00> : vector<8x8xf32>
    %82 = tpu.matmul %81, %79, %cst_76 {dimension_numbers = #tpu.dot_dimension_numbers<[1], [1], [0], [0], [0, 0, 1, 0], [], []>} : vector<8x8xbf16>, vector<8x8xbf16>, vector<8x8xf32> -> vector<8x8xf32>
    %c8_77 = arith.constant 8 : index
    %c0_78 = arith.constant 0 : index
    %83 = vector.load %arg11[%c8_77, %c0_78] : memref<32x8xf32, #tpu.memory_space<vmem>>, vector<8x8xf32>
    %84 = arith.addf %83, %82 : vector<8x8xf32>
    %c8_79 = arith.constant 8 : index
    %c0_80 = arith.constant 0 : index
    %85 = vector.load %arg11[%c8_79, %c0_80] : memref<32x8xf32, #tpu.memory_space<vmem>>, vector<8x8xf32>
    tpu.vector_store %arg11[%c8_79, %c0_80], %84 {strides = array<i32>} : memref<32x8xf32, #tpu.memory_space<vmem>>, vector<8x8xf32>,
    %c2_81 = arith.constant 2 : index
    %c0_82 = arith.constant 0 : index
    %c0_83 = arith.constant 0 : index
    %86 = vector.load %arg10[%c2_81, %c0_82, %c0_83] : memref<4x8x8xf32, #tpu.memory_space<vmem>>, vector<1x8x8xf32>
    %87 = vector.shape_cast %86 : vector<1x8x8xf32> to vector<8x8xf32>
    %88 = arith.mulf %87, %65 : vector<8x8xf32>
    %89 = arith.truncf %88 : vector<8x8xf32> to vector<8x8xbf16>
    %c0_84 = arith.constant 0 : index
    %c2_85 = arith.constant 2 : index
    %c0_86 = arith.constant 0 : index
    %c0_87 = arith.constant 0 : index
    %90 = vector.load %arg5[%c0_84, %c2_85, %c0_86, %c0_87] : memref<1x4x8x8xbf16, #tpu.memory_space<vmem>>, vector<1x1x8x8xbf16>
    %91 = vector.shape_cast %90 : vector<1x1x8x8xbf16> to vector<8x8xbf16>
    %cst_88 = arith.constant dense<0.000000e+00> : vector<8x8xf32>
    %92 = tpu.matmul %91, %89, %cst_88 {dimension_numbers = #tpu.dot_dimension_numbers<[1], [1], [0], [0], [0, 0, 1, 0], [], []>} : vector<8x8xbf16>, vector<8x8xbf16>, vector<8x8xf32> -> vector<8x8xf32>
    %c16_89 = arith.constant 16 : index
    %c0_90 = arith.constant 0 : index
    %93 = vector.load %arg11[%c16_89, %c0_90] : memref<32x8xf32, #tpu.memory_space<vmem>>, vector<8x8xf32>
    %94 = arith.addf %93, %92 : vector<8x8xf32>
    %c16_91 = arith.constant 16 : index
    %c0_92 = arith.constant 0 : index
    %95 = vector.load %arg11[%c16_91, %c0_92] : memref<32x8xf32, #tpu.memory_space<vmem>>, vector<8x8xf32>
    tpu.vector_store %arg11[%c16_91, %c0_92], %94 {strides = array<i32>} : memref<32x8xf32, #tpu.memory_space<vmem>>, vector<8x8xf32>,
    %c3_93 = arith.constant 3 : index
    %c0_94 = arith.constant 0 : index
    %c0_95 = arith.constant 0 : index
    %96 = vector.load %arg10[%c3_93, %c0_94, %c0_95] : memref<4x8x8xf32, #tpu.memory_space<vmem>>, vector<1x8x8xf32>
    %97 = vector.shape_cast %96 : vector<1x8x8xf32> to vector<8x8xf32>
    %98 = arith.mulf %97, %65 : vector<8x8xf32>
    %99 = arith.truncf %98 : vector<8x8xf32> to vector<8x8xbf16>
    %c0_96 = arith.constant 0 : index
    %c3_97 = arith.constant 3 : index
    %c0_98 = arith.constant 0 : index
    %c0_99 = arith.constant 0 : index
    %100 = vector.load %arg5[%c0_96, %c3_97, %c0_98, %c0_99] : memref<1x4x8x8xbf16, #tpu.memory_space<vmem>>, vector<1x1x8x8xbf16>
    %101 = vector.shape_cast %100 : vector<1x1x8x8xbf16> to vector<8x8xbf16>
    %cst_100 = arith.constant dense<0.000000e+00> : vector<8x8xf32>
    %102 = tpu.matmul %101, %99, %cst_100 {dimension_numbers = #tpu.dot_dimension_numbers<[1], [1], [0], [0], [0, 0, 1, 0], [], []>} : vector<8x8xbf16>, vector<8x8xbf16>, vector<8x8xf32> -> vector<8x8xf32>
    %c24_101 = arith.constant 24 : index
    %c0_102 = arith.constant 0 : index
    %103 = vector.load %arg11[%c24_101, %c0_102] : memref<32x8xf32, #tpu.memory_space<vmem>>, vector<8x8xf32>
    %104 = arith.addf %103, %102 : vector<8x8xf32>
    %c24_103 = arith.constant 24 : index
    %c0_104 = arith.constant 0 : index
    %105 = vector.load %arg11[%c24_103, %c0_104] : memref<32x8xf32, #tpu.memory_space<vmem>>, vector<8x8xf32>
    tpu.vector_store %arg11[%c24_103, %c0_104], %104 {strides = array<i32>} : memref<32x8xf32, #tpu.memory_space<vmem>>, vector<8x8xf32>,
    %c0_i32_105 = arith.constant 0 : i32
    %106 = arith.cmpi eq, %arg2, %c0_i32_105 : i32
    %107 = arith.extui %106 : i1 to i32
    %c0_i32_106 = arith.constant 0 : i32
    %108 = arith.cmpi ne, %107, %c0_i32_106 : i32
    scf.if %108 {
      %c0_107 = arith.constant 0 : index
      %c0_108 = arith.constant 0 : index
      %109 = vector.load %arg11[%c0_107, %c0_108] : memref<32x8xf32, #tpu.memory_space<vmem>>, vector<32x8xf32>
      %110 = tpu.transpose %109, [1, 0] : vector<32x8xf32> -> vector<8x32xf32>
      %c0_109 = arith.constant 0 : index
      %c0_110 = arith.constant 0 : index
      %c0_111 = arith.constant 0 : index
      %111 = vector.load %arg8[%c0_109, %c0_110, %c0_111] : memref<1x8x32xf32, #tpu.memory_space<vmem>>, vector<1x8x32xf32>
      %112 = vector.shape_cast %111 : vector<1x8x32xf32> to vector<8x32xf32>
      %113 = vector.shape_cast %110 : vector<8x32xf32> to vector<1x8x32xf32>
      tpu.vector_store %arg8[%c0_109, %c0_110, %c0_111], %113 {strides = array<i32>} : memref<1x8x32xf32, #tpu.memory_space<vmem>>, vector<1x8x32xf32>,
    } else {
    }
    return
  }
  func.func @transform_0(%arg0: i32, %arg1: i32, %arg2: i32) -> (i32, i32, i32) {
    %c0_i32 = arith.constant 0 : i32
    %c0_i32_0 = arith.constant 0 : i32
    return %arg0, %arg1, %c0_i32 : i32, i32, i32
  }
  func.func @transform_1(%arg0: i32, %arg1: i32, %arg2: i32) -> (i32, i32, i32, i32) {
    %c0_i32 = arith.constant 0 : i32
    %c0_i32_0 = arith.constant 0 : i32
    %c0_i32_1 = arith.constant 0 : i32
    return %arg0, %c0_i32, %arg2, %c0_i32_0 : i32, i32, i32, i32
  }
  func.func @transform_2(%arg0: i32, %arg1: i32, %arg2: i32) -> (i32, i32, i32, i32) {
    %c0_i32 = arith.constant 0 : i32
    %c0_i32_0 = arith.constant 0 : i32
    %c0_i32_1 = arith.constant 0 : i32
    return %arg0, %c0_i32, %c0_i32_0, %arg2 : i32, i32, i32, i32
  }
  func.func @transform_3(%arg0: i32, %arg1: i32, %arg2: i32) -> (i32, i32) {
    %c0_i32 = arith.constant 0 : i32
    %c0_i32_0 = arith.constant 0 : i32
    %c0_i32_1 = arith.constant 0 : i32
    return %c0_i32, %c0_i32_0 : i32, i32
  }
  func.func @transform_4(%arg0: i32, %arg1: i32, %arg2: i32) -> (i32, i32) {
    %c0_i32 = arith.constant 0 : i32
    %c0_i32_0 = arith.constant 0 : i32
    %c0_i32_1 = arith.constant 0 : i32
    return %c0_i32, %c0_i32_0 : i32, i32
  }
  func.func @transform_5(%arg0: i32, %arg1: i32, %arg2: i32) -> (i32, i32, i32) {
    %c0_i32 = arith.constant 0 : i32
    %c0_i32_0 = arith.constant 0 : i32
    return %arg0, %arg1, %c0_i32 : i32, i32, i32
  }
}

</mosaic_0001>

<llo_original>
// kernel: tpu_custom_call.1
$region0: #{tpu_custom_call.1}
  #allocation0 [shape = 'u32[]', space=smem, size = 0x4, offset = 0x4, fixed_abs, tag = 'smem constant byte address 0x4 - core index']
  #allocation1 [shape = 'u32[144,128]{1,0:T(1,128)}', space=vmem, size = 0x12000, scoped, tag = 'internal scratch']
  #allocation2 [shape = 'bf16[8,32]{1,0:T(8,128)(2,1)}', space=vmem, size = 0x800, scoped, tag = 'scratch operand']
  #allocation3 [shape = 'f32[4,8,8]{2,1,0:T(8,128)}', space=vmem, size = 0x4000, scoped, tag = 'scratch operand']
  #allocation4 [shape = 'f32[32,8]{1,0:T(8,128)}', space=vmem, size = 0x4000, scoped, tag = 'scratch operand']
  %s0 = inlined_call_operand.hbm [shape: bf16[2,8,32], index: 0, kind: input, shape index: {}]
  %s1 = inlined_call_operand.hbm [shape: bf16[2,4,8,8], index: 1, kind: input, shape index: {}]
  %s2 = inlined_call_operand.hbm [shape: bf16[2,4,8,8], index: 2, kind: input, shape index: {}]
  %s3 = inlined_call_operand.hbm [shape: bf16[32,32], index: 3, kind: input, shape index: {}]
  %s4 = inlined_call_operand.vmem [shape: f32[1,32], index: 4, kind: input, shape index: {}]
  %s5 = inlined_call_operand.hbm [shape: f32[2,8,32], index: 5, kind: output, shape index: {}]
  %s6 = sld [smem:[#allocation0]]
  $region77: #{tpu_custom_call.1} parent=0
    _
  %s8 = ssub.s32 1, %s6
  %s9 = scalar_select 0, %s8, %s6
  $region1: #{tpu_custom_call.1} parent=0
    #allocation5 [shape = 'u8[4096]{0}', space=vmem, size = 0x1000, scoped, tag = 'input window, operand 0']
    #allocation6 [shape = 's32[2]{0}', space=sflag, size = 0x8, scoped, tag = 'scoped memory for tpu_custom_call.1']
    #allocation7 [shape = 's32[2]{0}', space=sflag, size = 0x8, scoped, tag = 'scoped memory for tpu_custom_call.1']
    #allocation8 [shape = 'u8[16384]{0}', space=vmem, size = 0x4000, scoped, tag = 'input window, operand 1']
    #allocation9 [shape = 's32[2]{0}', space=sflag, size = 0x8, scoped, tag = 'scoped memory for tpu_custom_call.1']
    #allocation10 [shape = 'u8[16384]{0}', space=vmem, size = 0x4000, scoped, tag = 'input window, operand 2']
    #allocation11 [shape = 'u8[8192]{0}', space=vmem, size = 0x2000, scoped, tag = 'input window, operand 3, single buffered']
    #allocation12 [shape = 's32[1]{0}', space=sflag, size = 0x4, scoped, tag = 'scoped memory for tpu_custom_call.1']
    #allocation13 [shape = 'u8[8192]{0}', space=vmem, size = 0x2000, scoped, tag = 'output window, operand 0']
    %10 = vsyncpa [#allocation6], 0
    %s11 = scalar_lea.sflag [#allocation6], 1
    %12 = vsyncpa %s11, 0
    %13 = vsyncpa [#allocation9], 0
    %s14 = scalar_lea.sflag [#allocation9], 1
    %15 = vsyncpa %s14, 0
    %16 = vsyncpa [#allocation12], 0
    %17 = vsyncpa [#allocation7], 0
    %s18 = scalar_lea.sflag [#allocation7], 1
    %19 = vsyncpa %s18, 0
    loop: start=0, step=1, limit=4
    $region2: #{tpu_custom_call.1} parent=1 // loop_pre_header
      _
    $region3: #{tpu_custom_call.1} parent=1 // loop_header
      %s21 = sphi 0, %s25
      %p22 = scmp.ge.s32.totalorder %s21, 4
      %s28 = sphi 0, %s47
      %s29 = sphi 0, %s43
      %s30 = sphi 0, %s39
      %s31 = sphi 0, %s28
      %s32 = sphi 0, %s29
      %s33 = sphi 0, %s30
      %s34 = sphi 0, %s31
      %s35 = sphi 0, %s32
      %s36 = sphi 0, %s33
      %s52 = sphi 0, %s54
      %s55 = sphi 0, %s52
      %s56 = sphi 0, %s55
      %s72 = sphi 0, %s56
      %s80 = sphi 0, %s82
      %s83 = sphi 0, %s80
      %s84 = sphi 0, %s83
      %s100 = sphi 0, %s84
      %s108 = sphi 0, %s110
      %s111 = sphi 0, %s108
      %s112 = sphi 0, %s111
      %s128 = sphi 0, %s112
      %s132 = sphi 0, %s132
      %s134 = sphi 0, %s132
      %s135 = sphi 0, %s134
      %s149 = sphi 0, %s135
      %s153 = sphi 0, %s153
      %s155 = sphi 0, %s153
      %s156 = sphi 0, %s155
      %s170 = sphi 0, %s156
      %s178 = sphi 0, %s180
      %s181 = sphi 0, %s178
      %s182 = sphi 0, %s181
      %s198 = sphi 0, %s182
    $region4: #{tpu_custom_call.1} parent=1 // loop_header_branch
      %24 = sbr.rel (%p22) target = $region8
    $region5: #{tpu_custom_call.1} parent=1 // loop_body
      %s26 = ssub.s32 %s21, 1
      %s27 = ssub.s32 %s21, 2
      %s37 = sadd.s32 1, %s30
      %p38 = scmp.ge.s32.totalorder %s37, 1
      %s39 = scalar_select %p38, 0, %s37
      %s40 = sadd.s32 1, %s29
      %s41 = scalar_select %p38, %s40, %s29
      %p42 = scmp.ge.s32.totalorder %s41, 1
      %s43 = scalar_select %p42, 0, %s41
      %s44 = sadd.s32 1, %s28
      %s45 = scalar_select %p42, %s44, %s28
      %p46 = scmp.ge.s32.totalorder %s45, 2
      %s47 = scalar_select %p46, 0, %s45
      %s48 = ssub.s32 %s28, %s47
      %s49 = ssub.s32 %s29, %s43
      %s50 = sor.u32 %s48, %s49
      %p51 = scmp.eq.s32.totalorder %s50, 0
      %s53 = sadd.s32 %s52, 1
      %s54 = scalar_select %p51, %s52, %s53
      %p57 = pneg %p51
      %p58 = scmp.eq.s32.totalorder %s21, 1
      %p59 = por %p57, %p58
      %p60 = scmp.ne.s32.totalorder %s52, %s55
      %p61 = scmp.eq.s32.totalorder %s21, 0
      %p62 = por %p60, %p61
      %p63 = scmp.ne.s32.totalorder %s52, %s55
      %p64 = scmp.eq.s32.totalorder %s26, 1
      %p65 = por %p63, %p64
      %p66 = scmp.ne.s32.totalorder %s55, %s56
      %p67 = scmp.eq.s32.totalorder %s26, 0
      %p68 = por %p66, %p67
      %p69 = scmp.ne.s32.totalorder %s55, %s56
      %p70 = scmp.eq.s32.totalorder %s27, 1
      %p71 = por %p69, %p70
      %p73 = scmp.ne.s32.totalorder %s56, %s72
      %p74 = scmp.eq.s32.totalorder %s27, 0
      %p75 = por %p73, %p74
      %s76 = ssub.s32 %s28, %s47
      %s77 = ssub.s32 %s30, %s39
      %s78 = sor.u32 %s76, %s77
      %p79 = scmp.eq.s32.totalorder %s78, 0
      %s81 = sadd.s32 %s80, 1
      %s82 = scalar_select %p79, %s80, %s81
      %p85 = pneg %p79
      %p86 = scmp.eq.s32.totalorder %s21, 1
      %p87 = por %p85, %p86
      %p88 = scmp.ne.s32.totalorder %s80, %s83
      %p89 = scmp.eq.s32.totalorder %s21, 0
      %p90 = por %p88, %p89
      %p91 = scmp.ne.s32.totalorder %s80, %s83
      %p92 = scmp.eq.s32.totalorder %s26, 1
      %p93 = por %p91, %p92
      %p94 = scmp.ne.s32.totalorder %s83, %s84
      %p95 = scmp.eq.s32.totalorder %s26, 0
      %p96 = por %p94, %p95
      %p97 = scmp.ne.s32.totalorder %s83, %s84
      %p98 = scmp.eq.s32.totalorder %s27, 1
      %p99 = por %p97, %p98
      %p101 = scmp.ne.s32.totalorder %s84, %s100
      %p102 = scmp.eq.s32.totalorder %s27, 0
      %p103 = por %p101, %p102
      %s104 = ssub.s32 %s28, %s47
      %s105 = ssub.s32 %s30, %s39
      %s106 = sor.u32 %s104, %s105
      %p107 = scmp.eq.s32.totalorder %s106, 0
      %s109 = sadd.s32 %s108, 1
      %s110 = scalar_select %p107, %s108, %s109
      %p113 = pneg %p107
      %p114 = scmp.eq.s32.totalorder %s21, 1
      %p115 = por %p113, %p114
      %p116 = scmp.ne.s32.totalorder %s108, %s111
      %p117 = scmp.eq.s32.totalorder %s21, 0
      %p118 = por %p116, %p117
      %p119 = scmp.ne.s32.totalorder %s108, %s111
      %p120 = scmp.eq.s32.totalorder %s26, 1
      %p121 = por %p119, %p120
      %p122 = scmp.ne.s32.totalorder %s111, %s112
      %p123 = scmp.eq.s32.totalorder %s26, 0
      %p124 = por %p122, %p123
      %p125 = scmp.ne.s32.totalorder %s111, %s112
      %p126 = scmp.eq.s32.totalorder %s27, 1
      %p127 = por %p125, %p126
      %p129 = scmp.ne.s32.totalorder %s112, %s128
      %p130 = scmp.eq.s32.totalorder %s27, 0
      %p131 = por %p129, %p130
      %s133 = sadd.s32 %s132, 1
      %p136 = scmp.eq.s32.totalorder %s21, 1
      %p137 = scmp.ne.s32.totalorder %s132, %s134
      %p138 = scmp.eq.s32.totalorder %s21, 0
      %p139 = por %p137, %p138
      %p140 = scmp.ne.s32.totalorder %s132, %s134
      %p141 = scmp.eq.s32.totalorder %s26, 1
      %p142 = por %p140, %p141
      %p143 = scmp.ne.s32.totalorder %s134, %s135
      %p144 = scmp.eq.s32.totalorder %s26, 0
      %p145 = por %p143, %p144
      %p146 = scmp.ne.s32.totalorder %s134, %s135
      %p147 = scmp.eq.s32.totalorder %s27, 1
      %p148 = por %p146, %p147
      %p150 = scmp.ne.s32.totalorder %s135, %s149
      %p151 = scmp.eq.s32.totalorder %s27, 0
      %p152 = por %p150, %p151
      %s154 = sadd.s32 %s153, 1
      %p157 = scmp.eq.s32.totalorder %s21, 1
      %p158 = scmp.ne.s32.totalorder %s153, %s155
      %p159 = scmp.eq.s32.totalorder %s21, 0
      %p160 = por %p158, %p159
      %p161 = scmp.ne.s32.totalorder %s153, %s155
      %p162 = scmp.eq.s32.totalorder %s26, 1
      %p163 = por %p161, %p162
      %p164 = scmp.ne.s32.totalorder %s155, %s156
      %p165 = scmp.eq.s32.totalorder %s26, 0
      %p166 = por %p164, %p165
      %p167 = scmp.ne.s32.totalorder %s155, %s156
      %p168 = scmp.eq.s32.totalorder %s27, 1
      %p169 = por %p167, %p168
      %p171 = scmp.ne.s32.totalorder %s156, %s170
      %p172 = scmp.eq.s32.totalorder %s27, 0
      %p173 = por %p171, %p172
      %s174 = ssub.s32 %s28, %s47
      %s175 = ssub.s32 %s29, %s43
      %s176 = sor.u32 %s174, %s175
      %p177 = scmp.eq.s32.totalorder %s176, 0
      %s179 = sadd.s32 %s178, 1
      %s180 = scalar_select %p177, %s178, %s179
      %p183 = pneg %p177
      %p184 = scmp.eq.s32.totalorder %s21, 1
      %p185 = por %p183, %p184
      %p186 = scmp.ne.s32.totalorder %s178, %s181
      %p187 = scmp.eq.s32.totalorder %s21, 0
      %p188 = por %p186, %p187
      %p189 = scmp.ne.s32.totalorder %s178, %s181
      %p190 = scmp.eq.s32.totalorder %s26, 1
      %p191 = por %p189, %p190
      %p192 = scmp.ne.s32.totalorder %s181, %s182
      %p193 = scmp.eq.s32.totalorder %s26, 0
      %p194 = por %p192, %p193
      %p195 = scmp.ne.s32.totalorder %s181, %s182
      %p196 = scmp.eq.s32.totalorder %s27, 1
      %p197 = por %p195, %p196
      %p199 = scmp.ne.s32.totalorder %s182, %s198
      %p200 = scmp.eq.s32.totalorder %s27, 0
      %p201 = por %p199, %p200
      %p202 = scmp.le.s32.totalorder 1, %s21
      %p203 = scmp.lt.s32.totalorder %s21, 3
      %p204 = pnand %p202, %p203
      %p205 = pneg %p204
      // Predicated region
      $region9: #{tpu_custom_call.1} parent=5 // pred_check
        _
      $region10: #{tpu_custom_call.1} parent=5 // pred_check_branch
        %207 = sbr.rel (%p204) target = $region12
      $region11: #{tpu_custom_call.1} parent=5 // pred_region
        %s208 = ssub.s32 %s21, 1
        // Predicated region
        $region13: #{tpu_custom_call.1} parent=11 // pred_check
          %p209 = pneg %p145
        $region14: #{tpu_custom_call.1} parent=11 // pred_check_branch
          %211 = sbr.rel (%p209) target = $region16
        $region15: #{tpu_custom_call.1} parent=11 // pred_region
          %s213 = ssub.s32 256, 256
          %214 = vsyncadd [#allocation12], %s213
          %s215 = sshll.u32 [#allocation11], 4
          %s216 = int_to_ptr.vmem [resolvable:$true] %s215
          %221 = dma.hbm_to_vmem [thread:$0]  %s3, 256, %s216, [#allocation12], 64, 64, 4
        $region16: #{tpu_custom_call.1} parent=11 // pred_fallthru
          _
        // Predicated region
        $region17: #{tpu_custom_call.1} parent=11 // pred_check
          %p222 = pneg %p166
        $region18: #{tpu_custom_call.1} parent=11 // pred_check_branch
          %224 = sbr.rel (%p222) target = $region20
        $region19: #{tpu_custom_call.1} parent=11 // pred_region
          _
        $region20: #{tpu_custom_call.1} parent=11 // pred_fallthru
          _
      $region12: #{tpu_custom_call.1} parent=5 // pred_fallthru
        _
      %p225 = scmp.lt.s32.totalorder %s21, 2
      // Predicated region
      $region21: #{tpu_custom_call.1} parent=5 // pred_check
        %p226 = pneg %p225
      $region22: #{tpu_custom_call.1} parent=5 // pred_check_branch
        %228 = sbr.rel (%p226) target = $region24
      $region23: #{tpu_custom_call.1} parent=5 // pred_region
        // Predicated region
        $region25: #{tpu_custom_call.1} parent=23 // pred_check
          %p229 = pneg %p62
        $region26: #{tpu_custom_call.1} parent=23 // pred_check_branch
          %231 = sbr.rel (%p229) target = $region28
        $region27: #{tpu_custom_call.1} parent=23 // pred_region
          %s232 = sand.u32 %s52, 1
          %s233 = scalar_lea.sflag [#allocation6], %s232
          %s234 = sand.u32 %s52, 1
          %s235 = smul.addr %s234, 4
          %s236 = scalar_lea.vmem [#allocation5], %s235
          %s238 = ssub.s32 64, 64
          %239 = vsyncadd %s233, %s238
          %s240 = sadd.s32 %s29, %s28
          %s241 = smul.addr %s240, 64
          %s242 = scalar_lea.hbm %s0, %s241
          %s244 = sshll.u32 %s236, 4
          %s245 = int_to_ptr.vmem [resolvable:$true] %s244
          %247 = dma.hbm_to_vmem [thread:$0]  %s242, 64, %s245, %s233
        $region28: #{tpu_custom_call.1} parent=23 // pred_fallthru
          _
        // Predicated region
        $region29: #{tpu_custom_call.1} parent=23 // pred_check
          %p248 = pneg %p90
        $region30: #{tpu_custom_call.1} parent=23 // pred_check_branch
          %250 = sbr.rel (%p248) target = $region32
        $region31: #{tpu_custom_call.1} parent=23 // pred_region
          %s251 = sand.u32 %s21, 1
          %s252 = scalar_lea.sflag [#allocation9], %s251
          %s253 = sand.u32 %s80, 1
          %s254 = smul.addr %s253, 16
          %s255 = scalar_lea.vmem [#allocation8], %s254
          %s257 = ssub.s32 256, 256
          %258 = vsyncadd %s252, %s257
          %s259 = smul.addr %s28, 4
          %s260 = sadd.s32 %s30, %s259
          %s261 = smul.addr %s260, 64
          %s262 = scalar_lea.hbm %s1, %s261
          %s263 = sshll.u32 %s255, 4
          %s264 = int_to_ptr.vmem [resolvable:$true] %s263
          %269 = dma.hbm_to_vmem [thread:$0]  %s262, 256, %s264, %s252, 64, 64, 4
        $region32: #{tpu_custom_call.1} parent=23 // pred_fallthru
          _
        // Predicated region
        $region33: #{tpu_custom_call.1} parent=23 // pred_check
          %p270 = pneg %p118
        $region34: #{tpu_custom_call.1} parent=23 // pred_check_branch
          %272 = sbr.rel (%p270) target = $region36
        $region35: #{tpu_custom_call.1} parent=23 // pred_region
          %s273 = sand.u32 %s21, 1
          %s274 = scalar_lea.sflag [#allocation9], %s273
          %s275 = sand.u32 %s108, 1
          %s276 = smul.addr %s275, 16
          %s277 = scalar_lea.vmem [#allocation10], %s276
          %s279 = ssub.s32 256, 256
          %280 = vsyncadd %s274, %s279
          %s281 = smul.addr %s28, 4
          %s282 = sadd.s32 %s30, %s281
          %s283 = smul.addr %s282, 64
          %s284 = scalar_lea.hbm %s2, %s283
          %s285 = sshll.u32 %s277, 4
          %s286 = int_to_ptr.vmem [resolvable:$true] %s285
          %291 = dma.hbm_to_vmem [thread:$0]  %s284, 256, %s286, %s274, 64, 64, 4
        $region36: #{tpu_custom_call.1} parent=23 // pred_fallthru
          _
      $region24: #{tpu_custom_call.1} parent=5 // pred_fallthru
        _
      %p292 = scmp.le.s32.totalorder 1, %s21
      %p293 = scmp.lt.s32.totalorder %s21, 3
      %p294 = pnand %p292, %p293
      %p295 = pneg %p294
      // Predicated region
      $region37: #{tpu_custom_call.1} parent=5 // pred_check
        _
      $region38: #{tpu_custom_call.1} parent=5 // pred_check_branch
        %297 = sbr.rel (%p294) target = $region40
      $region39: #{tpu_custom_call.1} parent=5 // pred_region
        %s298 = ssub.s32 %s21, 1
        %s299 = sand.u32 %s55, 1
        %s300 = scalar_lea.sflag [#allocation6], %s299
        %s301 = sand.u32 %s55, 1
        %s302 = smul.addr %s301, 4
        %s303 = scalar_lea.vmem [#allocation5], %s302
        // Predicated region
        $region41: #{tpu_custom_call.1} parent=39 // pred_check
          %p304 = pneg %p68
        $region42: #{tpu_custom_call.1} parent=39 // pred_check_branch
          %306 = sbr.rel (%p304) target = $region44
        $region43: #{tpu_custom_call.1} parent=39 // pred_region
          %307 = dma.done %s300, 64
        $region44: #{tpu_custom_call.1} parent=39 // pred_fallthru
          _
        %s308 = sand.u32 %s26, 1
        %s309 = scalar_lea.sflag [#allocation9], %s308
        %s310 = sand.u32 %s83, 1
        %s311 = smul.addr %s310, 16
        %s312 = scalar_lea.vmem [#allocation8], %s311
        // Predicated region
        $region45: #{tpu_custom_call.1} parent=39 // pred_check
          %p313 = pneg %p96
        $region46: #{tpu_custom_call.1} parent=39 // pred_check_branch
          %315 = sbr.rel (%p313) target = $region48
        $region47: #{tpu_custom_call.1} parent=39 // pred_region
          %316 = dma.done %s309, 256
        $region48: #{tpu_custom_call.1} parent=39 // pred_fallthru
          _
        %s317 = sand.u32 %s26, 1
        %s318 = scalar_lea.sflag [#allocation9], %s317
        %s319 = sand.u32 %s111, 1
        %s320 = smul.addr %s319, 16
        %s321 = scalar_lea.vmem [#allocation10], %s320
        // Predicated region
        $region49: #{tpu_custom_call.1} parent=39 // pred_check
          %p322 = pneg %p124
        $region50: #{tpu_custom_call.1} parent=39 // pred_check_branch
          %324 = sbr.rel (%p322) target = $region52
        $region51: #{tpu_custom_call.1} parent=39 // pred_region
          %325 = dma.done %s318, 256
        $region52: #{tpu_custom_call.1} parent=39 // pred_fallthru
          _
        // Predicated region
        $region53: #{tpu_custom_call.1} parent=39 // pred_check
          %p326 = pneg %p145
        $region54: #{tpu_custom_call.1} parent=39 // pred_check_branch
          %328 = sbr.rel (%p326) target = $region56
        $region55: #{tpu_custom_call.1} parent=39 // pred_region
          %329 = dma.done [#allocation12], 256
        $region56: #{tpu_custom_call.1} parent=39 // pred_fallthru
          _
        %s330 = sand.u32 %s55, 1
        %s331 = scalar_lea.sflag [#allocation6], %s330
        %s332 = sand.u32 %s55, 1
        %s333 = smul.addr %s332, 4
        %s334 = scalar_lea.vmem [#allocation5], %s333
        %p335 = pneg %p68
        %p336 = pneg %p65
        %s337 = sand.u32 %s26, 1
        %s338 = scalar_lea.sflag [#allocation9], %s337
        %s339 = sand.u32 %s83, 1
        %s340 = smul.addr %s339, 16
        %s341 = scalar_lea.vmem [#allocation8], %s340
        %p342 = pneg %p96
        %p343 = pneg %p93
        %s344 = sand.u32 %s26, 1
        %s345 = scalar_lea.sflag [#allocation9], %s344
        %s346 = sand.u32 %s111, 1
        %s347 = smul.addr %s346, 16
        %s348 = scalar_lea.vmem [#allocation10], %s347
        %p349 = pneg %p124
        %p350 = pneg %p121
        %p351 = pneg %p145
        %p352 = pneg %p142
        %p353 = pneg %p166
        %p354 = pneg %p163
        %p355 = pneg %p194
        %p356 = pneg %p191
        %s357 = sand.u32 %s181, 1
        %s358 = scalar_lea.sflag [#allocation7], %s357
        %s359 = sand.u32 %s181, 1
        %s360 = smul.addr %s359, 8
        %s361 = scalar_lea.vmem [#allocation13], %s360
        %p363 = scmp.eq.s32.totalorder %s33, 0
        // Predicated region
        $region57: #{tpu_custom_call.1} parent=39 // pred_check
          %p364 = pneg %p363
        $region58: #{tpu_custom_call.1} parent=39 // pred_check_branch
          %366 = sbr.rel (%p364) target = $region60
        $region59: #{tpu_custom_call.1} parent=39 // pred_region
          %v367 = vld [vmem:[%s303] sm:$0xf]
          %v368 = vld [vmem:[#allocation11] sm:$0xf]
          %v369 = vld [vmem:[#allocation11 + $0x4] sm:$0xf]
          %v370 = vld [vmem:[#allocation11 + $0x8] sm:$0xf]
          %v371 = vld [vmem:[#allocation11 + $0xc] sm:$0xf]
          %v372 = vld [vmem:[%s4] sm:$0x1]
          %v374 = vlaneseq
          %v375 = vshrl.u32 %v374, 7
          %v376 = vsub.s32 0, %v375
          %v377 = vrot.slane %v372, %v376
          %v383 = vunpack.c.l.b16 %v368
          %v384 = vunpack.c.l.b16 %v369
          %v385 = vunpack.c.l.b16 %v370
          %v386 = vunpack.c.l.b16 %v371
          %v387 = vpack.c.b16 %v384, %v383
          %v388 = vpack.c.b16 %v386, %v385
          %vm391 = vcmask 261120
          %v393 = vsel %vm391, %v367, 0
          %395 = vmatprep.subr.bf16.mxu0 0
          %396 = vmatpush1.bf16.msra.mxu0 %v387
          %397 = vmatprep.subr.bf16.mxu0 0
          %398 = vmatpush1.bf16.msra.mxu0 %v388
          %399 = vmatprep.subr.bf16.mxu0 0
          %400 = vmatpush1.bf16.msra.mxu0 0
          %401 = vmatprep.subr.bf16.mxu0 0
          %402 = vmatpush1.bf16.msra.mxu0 0
          %403 = vmatprep.subr.bf16.mxu0 0
          %404 = vmatpush1.bf16.msra.mxu0 0
          %405 = vmatprep.subr.bf16.mxu0 0
          %406 = vmatpush1.bf16.msra.mxu0 0
          %407 = vmatprep.subr.bf16.mxu0 0
          %408 = vmatpush1.bf16.msra.mxu0 0
          %409 = vmatprep.subr.bf16.mxu0 0
          %410 = vmatpush1.bf16.msra.mxu0 0
          %411 = vmatprep.subr.bf16.mxu0 0
          %412 = vmatpush1.bf16.msra.mxu0 0
          %413 = vmatprep.subr.bf16.mxu0 0
          %414 = vmatpush1.bf16.msra.mxu0 0
          %415 = vmatprep.subr.bf16.mxu0 0
          %416 = vmatpush1.bf16.msra.mxu0 0
          %417 = vmatprep.subr.bf16.mxu0 0
          %418 = vmatpush1.bf16.msra.mxu0 0
          %419 = vmatprep.subr.bf16.mxu0 0
          %420 = vmatpush1.bf16.msra.mxu0 0
          %421 = vmatprep.subr.bf16.mxu0 0
          %422 = vmatpush1.bf16.msra.mxu0 0
          %423 = vmatprep.subr.bf16.mxu0 0
          %424 = vmatpush1.bf16.msra.mxu0 0
          %425 = vmatprep.subr.bf16.mxu0 0
          %426 = vmatpush1.bf16.msra.mxu0 0
          %427 = vmatprep.mubr.bf16.mxu0 0
          %428 = vmatmul.mubr.bf16.gmra.mrb[0].mxu0 %v393
          %v429 = vpop.f32.mrb[0].mxu0
          %v430 = vadd.f32 %v377, %v429
          %v431 = vpop.f32.mrb[0].mxu0
          %v432 = vpop.f32.mrb[0].mxu0
          %v433 = vpop.f32.mrb[0].mxu0
          %434 = vdwg.mxu0
          %v435 = vpack.c.bf16 %v430, %v430
          %vm436 = vcmask 257024
          %437 = vst.msk [vmem:[#allocation2] sm:$0xf] %vm436, %v435
          %vm438 = vcmask 64512
          %439 = vst.msk [vmem:[#allocation4] sm:$0xff] %vm438, 0.0
          %440 = vst.msk [vmem:[#allocation4 + $0x8] sm:$0xff] %vm438, 0.0
          %441 = vst.msk [vmem:[#allocation4 + $0x10] sm:$0xff] %vm438, 0.0
          %442 = vst.msk [vmem:[#allocation4 + $0x18] sm:$0xff] %vm438, 0.0
        $region60: #{tpu_custom_call.1} parent=39 // pred_fallthru
          _
        %v443 = vld [vmem:[#allocation2] sm:$0xf]
        %v444 = vld [vmem:[%s312] sm:$0xf]
        %vm445 = vcmask 64512
        %v447 = vsel %vm445, %v443, 0
        %v450 = vsel %vm445, %v444, 0
        %452 = vmatprep.subr.bf16.mxu0 0
        %453 = vmatpush1.bf16.xpose.msra.mxu0 %v450
        %454 = vmatprep.subr.bf16.mxu0 0
        %455 = vmatpush1.bf16.xpose.msra.mxu0 0
        %456 = vmatprep.subr.bf16.mxu0 0
        %457 = vmatpush1.bf16.xpose.msra.mxu0 0
        %458 = vmatprep.subr.bf16.mxu0 0
        %459 = vmatpush1.bf16.xpose.msra.mxu0 0
        %460 = vmatprep.subr.bf16.mxu0 0
        %461 = vmatpush1.bf16.xpose.msra.mxu0 0
        %462 = vmatprep.subr.bf16.mxu0 0
        %463 = vmatpush1.bf16.xpose.msra.mxu0 0
        %464 = vmatprep.subr.bf16.mxu0 0
        %465 = vmatpush1.bf16.xpose.msra.mxu0 0
        %466 = vmatprep.subr.bf16.mxu0 0
        %467 = vmatpush1.bf16.xpose.msra.mxu0 0
        %468 = vmatprep.subr.bf16.mxu0 0
        %469 = vmatpush1.bf16.xpose.msra.mxu0 0
        %470 = vmatprep.subr.bf16.mxu0 0
        %471 = vmatpush1.bf16.xpose.msra.mxu0 0
        %472 = vmatprep.subr.bf16.mxu0 0
        %473 = vmatpush1.bf16.xpose.msra.mxu0 0
        %474 = vmatprep.subr.bf16.mxu0 0
        %475 = vmatpush1.bf16.xpose.msra.mxu0 0
        %476 = vmatprep.subr.bf16.mxu0 0
        %477 = vmatpush1.bf16.xpose.msra.mxu0 0
        %478 = vmatprep.subr.bf16.mxu0 0
        %479 = vmatpush1.bf16.xpose.msra.mxu0 0
        %480 = vmatprep.subr.bf16.mxu0 0
        %481 = vmatpush1.bf16.xpose.msra.mxu0 0
        %482 = vmatprep.subr.bf16.mxu0 0
        %483 = vmatpush1.bf16.xpose.msra.mxu0 0
        %484 = vmatprep.mubr.bf16.mxu0 0
        %485 = vmatmul.mubr.bf16.gmra.mrb[0].mxu0 %v447
        %v486 = vpop.f32.mrb[0].mxu0
        %v487 = vadd.f32 0.0, %v486
        %v488 = vpop.f32.mrb[0].mxu0
        %v489 = vpop.f32.mrb[0].mxu0
        %v490 = vpop.f32.mrb[0].mxu0
        %491 = vdwg.mxu0
        %492 = vst.msk [vmem:[#allocation3] sm:$0xff] %vm445, %v487
        %v493 = vld [vmem:[#allocation2] sm:$0xf]
        %s494 = scalar_lea.vmem %s312, 4 [#allocation8]
        %v495 = vld [vmem:[%s494] sm:$0xf]
        %v497 = vunpack.c.l.b16 %v493
        %v498 = vpack.c.b16 %v497, %v497
        %499 = vrot.lane.b32.xlu0 %v498, 120
        %v500 = vpop.permute.xlu0 %499
        %v502 = vsel %vm445, %v500, 0
        %v505 = vsel %vm445, %v495, 0
        %507 = vmatprep.subr.bf16.mxu0 0
        %508 = vmatpush1.bf16.xpose.msra.mxu0 %v505
        %509 = vmatprep.subr.bf16.mxu0 0
        %510 = vmatpush1.bf16.xpose.msra.mxu0 0
        %511 = vmatprep.subr.bf16.mxu0 0
        %512 = vmatpush1.bf16.xpose.msra.mxu0 0
        %513 = vmatprep.subr.bf16.mxu0 0
        %514 = vmatpush1.bf16.xpose.msra.mxu0 0
        %515 = vmatprep.subr.bf16.mxu0 0
        %516 = vmatpush1.bf16.xpose.msra.mxu0 0
        %517 = vmatprep.subr.bf16.mxu0 0
        %518 = vmatpush1.bf16.xpose.msra.mxu0 0
        %519 = vmatprep.subr.bf16.mxu0 0
        %520 = vmatpush1.bf16.xpose.msra.mxu0 0
        %521 = vmatprep.subr.bf16.mxu0 0
        %522 = vmatpush1.bf16.xpose.msra.mxu0 0
        %523 = vmatprep.subr.bf16.mxu0 0
        %524 = vmatpush1.bf16.xpose.msra.mxu0 0
        %525 = vmatprep.subr.bf16.mxu0 0
        %526 = vmatpush1.bf16.xpose.msra.mxu0 0
        %527 = vmatprep.subr.bf16.mxu0 0
        %528 = vmatpush1.bf16.xpose.msra.mxu0 0
        %529 = vmatprep.subr.bf16.mxu0 0
        %530 = vmatpush1.bf16.xpose.msra.mxu0 0
        %531 = vmatprep.subr.bf16.mxu0 0
        %532 = vmatpush1.bf16.xpose.msra.mxu0 0
        %533 = vmatprep.subr.bf16.mxu0 0
        %534 = vmatpush1.bf16.xpose.msra.mxu0 0
        %535 = vmatprep.subr.bf16.mxu0 0
        %536 = vmatpush1.bf16.xpose.msra.mxu0 0
        %537 = vmatprep.subr.bf16.mxu0 0
        %538 = vmatpush1.bf16.xpose.msra.mxu0 0
        %539 = vmatprep.mubr.bf16.mxu0 0
        %540 = vmatmul.mubr.bf16.gmra.mrb[0].mxu0 %v502
        %v541 = vpop.f32.mrb[0].mxu0
        %v542 = vadd.f32 0.0, %v541
        %v543 = vpop.f32.mrb[0].mxu0
        %v544 = vpop.f32.mrb[0].mxu0
        %v545 = vpop.f32.mrb[0].mxu0
        %546 = vdwg.mxu0
        %s547 = scalar_lea.vmem [#allocation3], 8
        %548 = vst.msk [vmem:[%s547] sm:$0xff] %vm445, %v542
        %v549 = vmax.f32 %v487, %v542
        %v550 = vld [vmem:[#allocation2] sm:$0xf]
        %s551 = scalar_lea.vmem %s312, 8 [#allocation8]
        %v552 = vld [vmem:[%s551] sm:$0xf]
        %v554 = vunpack.c.l.b16 %v550
        %v555 = vpack.c.b16 %v554, %v554
        %556 = vrot.lane.b32.xlu0 %v555, 112
        %v557 = vpop.permute.xlu0 %556
        %v559 = vsel %vm445, %v557, 0
        %v562 = vsel %vm445, %v552, 0
        %564 = vmatprep.subr.bf16.mxu0 0
        %565 = vmatpush1.bf16.xpose.msra.mxu0 %v562
        %566 = vmatprep.subr.bf16.mxu0 0
        %567 = vmatpush1.bf16.xpose.msra.mxu0 0
        %568 = vmatprep.subr.bf16.mxu0 0
        %569 = vmatpush1.bf16.xpose.msra.mxu0 0
        %570 = vmatprep.subr.bf16.mxu0 0
        %571 = vmatpush1.bf16.xpose.msra.mxu0 0
        %572 = vmatprep.subr.bf16.mxu0 0
        %573 = vmatpush1.bf16.xpose.msra.mxu0 0
        %574 = vmatprep.subr.bf16.mxu0 0
        %575 = vmatpush1.bf16.xpose.msra.mxu0 0
        %576 = vmatprep.subr.bf16.mxu0 0
        %577 = vmatpush1.bf16.xpose.msra.mxu0 0
        %578 = vmatprep.subr.bf16.mxu0 0
        %579 = vmatpush1.bf16.xpose.msra.mxu0 0
        %580 = vmatprep.subr.bf16.mxu0 0
        %581 = vmatpush1.bf16.xpose.msra.mxu0 0
        %582 = vmatprep.subr.bf16.mxu0 0
        %583 = vmatpush1.bf16.xpose.msra.mxu0 0
        %584 = vmatprep.subr.bf16.mxu0 0
        %585 = vmatpush1.bf16.xpose.msra.mxu0 0
        %586 = vmatprep.subr.bf16.mxu0 0
        %587 = vmatpush1.bf16.xpose.msra.mxu0 0
        %588 = vmatprep.subr.bf16.mxu0 0
        %589 = vmatpush1.bf16.xpose.msra.mxu0 0
        %590 = vmatprep.subr.bf16.mxu0 0
        %591 = vmatpush1.bf16.xpose.msra.mxu0 0
        %592 = vmatprep.subr.bf16.mxu0 0
        %593 = vmatpush1.bf16.xpose.msra.mxu0 0
        %594 = vmatprep.subr.bf16.mxu0 0
        %595 = vmatpush1.bf16.xpose.msra.mxu0 0
        %596 = vmatprep.mubr.bf16.mxu0 0
        %597 = vmatmul.mubr.bf16.gmra.mrb[0].mxu0 %v559
        %v598 = vpop.f32.mrb[0].mxu0
        %v599 = vadd.f32 0.0, %v598
        %v600 = vpop.f32.mrb[0].mxu0
        %v601 = vpop.f32.mrb[0].mxu0
        %v602 = vpop.f32.mrb[0].mxu0
        %603 = vdwg.mxu0
        %s604 = scalar_lea.vmem [#allocation3], 16
        %605 = vst.msk [vmem:[%s604] sm:$0xff] %vm445, %v599
        %v606 = vmax.f32 %v549, %v599
        %v607 = vld [vmem:[#allocation2] sm:$0xf]
        %s608 = scalar_lea.vmem %s312, 12 [#allocation8]
        %v609 = vld [vmem:[%s608] sm:$0xf]
        %v611 = vunpack.c.l.b16 %v607
        %v612 = vpack.c.b16 %v611, %v611
        %613 = vrot.lane.b32.xlu0 %v612, 104
        %v614 = vpop.permute.xlu0 %613
        %v616 = vsel %vm445, %v614, 0
        %v619 = vsel %vm445, %v609, 0
        %621 = vmatprep.subr.bf16.mxu0 0
        %622 = vmatpush1.bf16.xpose.msra.mxu0 %v619
        %623 = vmatprep.subr.bf16.mxu0 0
        %624 = vmatpush1.bf16.xpose.msra.mxu0 0
        %625 = vmatprep.subr.bf16.mxu0 0
        %626 = vmatpush1.bf16.xpose.msra.mxu0 0
        %627 = vmatprep.subr.bf16.mxu0 0
        %628 = vmatpush1.bf16.xpose.msra.mxu0 0
        %629 = vmatprep.subr.bf16.mxu0 0
        %630 = vmatpush1.bf16.xpose.msra.mxu0 0
        %631 = vmatprep.subr.bf16.mxu0 0
        %632 = vmatpush1.bf16.xpose.msra.mxu0 0
        %633 = vmatprep.subr.bf16.mxu0 0
        %634 = vmatpush1.bf16.xpose.msra.mxu0 0
        %635 = vmatprep.subr.bf16.mxu0 0
        %636 = vmatpush1.bf16.xpose.msra.mxu0 0
        %637 = vmatprep.subr.bf16.mxu0 0
        %638 = vmatpush1.bf16.xpose.msra.mxu0 0
        %639 = vmatprep.subr.bf16.mxu0 0
        %640 = vmatpush1.bf16.xpose.msra.mxu0 0
        %641 = vmatprep.subr.bf16.mxu0 0
        %642 = vmatpush1.bf16.xpose.msra.mxu0 0
        %643 = vmatprep.subr.bf16.mxu0 0
        %644 = vmatpush1.bf16.xpose.msra.mxu0 0
        %645 = vmatprep.subr.bf16.mxu0 0
        %646 = vmatpush1.bf16.xpose.msra.mxu0 0
        %647 = vmatprep.subr.bf16.mxu0 0
        %648 = vmatpush1.bf16.xpose.msra.mxu0 0
        %649 = vmatprep.subr.bf16.mxu0 0
        %650 = vmatpush1.bf16.xpose.msra.mxu0 0
        %651 = vmatprep.subr.bf16.mxu0 0
        %652 = vmatpush1.bf16.xpose.msra.mxu0 0
        %653 = vmatprep.mubr.bf16.mxu0 0
        %654 = vmatmul.mubr.bf16.gmra.mrb[0].mxu0 %v616
        %v655 = vpop.f32.mrb[0].mxu0
        %v656 = vadd.f32 0.0, %v655
        %v657 = vpop.f32.mrb[0].mxu0
        %v658 = vpop.f32.mrb[0].mxu0
        %v659 = vpop.f32.mrb[0].mxu0
        %660 = vdwg.mxu0
        %s661 = scalar_lea.vmem [#allocation3], 24
        %662 = vst.msk [vmem:[%s661] sm:$0xff] %vm445, %v656
        %v663 = vmax.f32 %v606, %v656
        %v664 = vld [vmem:[#allocation3] sm:$0xff]
        %v665 = vsub.f32 %v664, %v663
        %v666 = vmul.f32 %v665, 1.442695
        %v667 = vpow.pop %v666
        %668 = vst.msk [vmem:[#allocation3] sm:$0xff] %vm445, %v667
        %v669 = vld [vmem:[%s547] sm:$0xff]
        %v670 = vsub.f32 %v669, %v663
        %v671 = vmul.f32 %v670, 1.442695
        %v672 = vpow.pop %v671
        %673 = vst.msk [vmem:[%s547] sm:$0xff] %vm445, %v672
        %v674 = vadd.f32 %v667, %v672
        %v675 = vld [vmem:[%s604] sm:$0xff]
        %v676 = vsub.f32 %v675, %v663
        %v677 = vmul.f32 %v676, 1.442695
        %v678 = vpow.pop %v677
        %679 = vst.msk [vmem:[%s604] sm:$0xff] %vm445, %v678
        %v680 = vadd.f32 %v674, %v678
        %v681 = vld [vmem:[%s661] sm:$0xff]
        %v682 = vsub.f32 %v681, %v663
        %v683 = vmul.f32 %v682, 1.442695
        %v684 = vpow.pop %v683
        %685 = vst.msk [vmem:[%s661] sm:$0xff] %vm445, %v684
        %v686 = vadd.f32 %v680, %v684
        %v687 = vrcp.pop %v686
        %v688 = vld [vmem:[#allocation3] sm:$0xff]
        %v689 = vmul.f32 %v688, %v687
        %v690 = vpack.c.bf16 %v689, %v689
        %v691 = vld [vmem:[%s321] sm:$0xf]
        %v693 = vsel %vm445, %v691, 0
        %v696 = vsel %vm445, %v690, 0
        %698 = vmatprep.subr.bf16.mxu0 0
        %699 = vmatpush1.bf16.xpose.msra.mxu0 %v696
        %700 = vmatprep.subr.bf16.mxu0 0
        %701 = vmatpush1.bf16.xpose.msra.mxu0 0
        %702 = vmatprep.subr.bf16.mxu0 0
        %703 = vmatpush1.bf16.xpose.msra.mxu0 0
        %704 = vmatprep.subr.bf16.mxu0 0
        %705 = vmatpush1.bf16.xpose.msra.mxu0 0
        %706 = vmatprep.subr.bf16.mxu0 0
        %707 = vmatpush1.bf16.xpose.msra.mxu0 0
        %708 = vmatprep.subr.bf16.mxu0 0
        %709 = vmatpush1.bf16.xpose.msra.mxu0 0
        %710 = vmatprep.subr.bf16.mxu0 0
        %711 = vmatpush1.bf16.xpose.msra.mxu0 0
        %712 = vmatprep.subr.bf16.mxu0 0
        %713 = vmatpush1.bf16.xpose.msra.mxu0 0
        %714 = vmatprep.subr.bf16.mxu0 0
        %715 = vmatpush1.bf16.xpose.msra.mxu0 0
        %716 = vmatprep.subr.bf16.mxu0 0
        %717 = vmatpush1.bf16.xpose.msra.mxu0 0
        %718 = vmatprep.subr.bf16.mxu0 0
        %719 = vmatpush1.bf16.xpose.msra.mxu0 0
        %720 = vmatprep.subr.bf16.mxu0 0
        %721 = vmatpush1.bf16.xpose.msra.mxu0 0
        %722 = vmatprep.subr.bf16.mxu0 0
        %723 = vmatpush1.bf16.xpose.msra.mxu0 0
        %724 = vmatprep.subr.bf16.mxu0 0
        %725 = vmatpush1.bf16.xpose.msra.mxu0 0
        %726 = vmatprep.subr.bf16.mxu0 0
        %727 = vmatpush1.bf16.xpose.msra.mxu0 0
        %728 = vmatprep.subr.bf16.mxu0 0
        %729 = vmatpush1.bf16.xpose.msra.mxu0 0
        %730 = vmatprep.mubr.bf16.mxu0 0
        %731 = vmatmul.mubr.bf16.gmra.mrb[0].mxu0 %v693
        %v732 = vpop.f32.mrb[0].mxu0
        %v733 = vadd.f32 0.0, %v732
        %v734 = vpop.f32.mrb[0].mxu0
        %v735 = vpop.f32.mrb[0].mxu0
        %v736 = vpop.f32.mrb[0].mxu0
        %737 = vdwg.mxu0
        %v738 = vld [vmem:[#allocation4] sm:$0xff]
        %v739 = vadd.f32 %v738, %v733
        %740 = vst.msk [vmem:[#allocation4] sm:$0xff] %vm445, %v739
        %v741 = vld [vmem:[%s547] sm:$0xff]
        %v742 = vmul.f32 %v741, %v687
        %v743 = vpack.c.bf16 %v742, %v742
        %s744 = scalar_lea.vmem %s321, 4 [#allocation10]
        %v745 = vld [vmem:[%s744] sm:$0xf]
        %v747 = vsel %vm445, %v745, 0
        %v750 = vsel %vm445, %v743, 0
        %752 = vmatprep.subr.bf16.mxu0 0
        %753 = vmatpush1.bf16.xpose.msra.mxu0 %v750
        %754 = vmatprep.subr.bf16.mxu0 0
        %755 = vmatpush1.bf16.xpose.msra.mxu0 0
        %756 = vmatprep.subr.bf16.mxu0 0
        %757 = vmatpush1.bf16.xpose.msra.mxu0 0
        %758 = vmatprep.subr.bf16.mxu0 0
        %759 = vmatpush1.bf16.xpose.msra.mxu0 0
        %760 = vmatprep.subr.bf16.mxu0 0
        %761 = vmatpush1.bf16.xpose.msra.mxu0 0
        %762 = vmatprep.subr.bf16.mxu0 0
        %763 = vmatpush1.bf16.xpose.msra.mxu0 0
        %764 = vmatprep.subr.bf16.mxu0 0
        %765 = vmatpush1.bf16.xpose.msra.mxu0 0
        %766 = vmatprep.subr.bf16.mxu0 0
        %767 = vmatpush1.bf16.xpose.msra.mxu0 0
        %768 = vmatprep.subr.bf16.mxu0 0
        %769 = vmatpush1.bf16.xpose.msra.mxu0 0
        %770 = vmatprep.subr.bf16.mxu0 0
        %771 = vmatpush1.bf16.xpose.msra.mxu0 0
        %772 = vmatprep.subr.bf16.mxu0 0
        %773 = vmatpush1.bf16.xpose.msra.mxu0 0
        %774 = vmatprep.subr.bf16.mxu0 0
        %775 = vmatpush1.bf16.xpose.msra.mxu0 0
        %776 = vmatprep.subr.bf16.mxu0 0
        %777 = vmatpush1.bf16.xpose.msra.mxu0 0
        %778 = vmatprep.subr.bf16.mxu0 0
        %779 = vmatpush1.bf16.xpose.msra.mxu0 0
        %780 = vmatprep.subr.bf16.mxu0 0
        %781 = vmatpush1.bf16.xpose.msra.mxu0 0
        %782 = vmatprep.subr.bf16.mxu0 0
        %783 = vmatpush1.bf16.xpose.msra.mxu0 0
        %784 = vmatprep.mubr.bf16.mxu0 0
        %785 = vmatmul.mubr.bf16.gmra.mrb[0].mxu0 %v747
        %v786 = vpop.f32.mrb[0].mxu0
        %v787 = vadd.f32 0.0, %v786
        %v788 = vpop.f32.mrb[0].mxu0
        %v789 = vpop.f32.mrb[0].mxu0
        %v790 = vpop.f32.mrb[0].mxu0
        %791 = vdwg.mxu0
        %v792 = vld [vmem:[#allocation4 + $0x8] sm:$0xff]
        %v793 = vadd.f32 %v792, %v787
        %794 = vst.msk [vmem:[#allocation4 + $0x8] sm:$0xff] %vm445, %v793
        %v795 = vld [vmem:[%s604] sm:$0xff]
        %v796 = vmul.f32 %v795, %v687
        %v797 = vpack.c.bf16 %v796, %v796
        %s798 = scalar_lea.vmem %s321, 8 [#allocation10]
        %v799 = vld [vmem:[%s798] sm:$0xf]
        %v801 = vsel %vm445, %v799, 0
        %v804 = vsel %vm445, %v797, 0
        %806 = vmatprep.subr.bf16.mxu0 0
        %807 = vmatpush1.bf16.xpose.msra.mxu0 %v804
        %808 = vmatprep.subr.bf16.mxu0 0
        %809 = vmatpush1.bf16.xpose.msra.mxu0 0
        %810 = vmatprep.subr.bf16.mxu0 0
        %811 = vmatpush1.bf16.xpose.msra.mxu0 0
        %812 = vmatprep.subr.bf16.mxu0 0
        %813 = vmatpush1.bf16.xpose.msra.mxu0 0
        %814 = vmatprep.subr.bf16.mxu0 0
        %815 = vmatpush1.bf16.xpose.msra.mxu0 0
        %816 = vmatprep.subr.bf16.mxu0 0
        %817 = vmatpush1.bf16.xpose.msra.mxu0 0
        %818 = vmatprep.subr.bf16.mxu0 0
        %819 = vmatpush1.bf16.xpose.msra.mxu0 0
        %820 = vmatprep.subr.bf16.mxu0 0
        %821 = vmatpush1.bf16.xpose.msra.mxu0 0
        %822 = vmatprep.subr.bf16.mxu0 0
        %823 = vmatpush1.bf16.xpose.msra.mxu0 0
        %824 = vmatprep.subr.bf16.mxu0 0
        %825 = vmatpush1.bf16.xpose.msra.mxu0 0
        %826 = vmatprep.subr.bf16.mxu0 0
        %827 = vmatpush1.bf16.xpose.msra.mxu0 0
        %828 = vmatprep.subr.bf16.mxu0 0
        %829 = vmatpush1.bf16.xpose.msra.mxu0 0
        %830 = vmatprep.subr.bf16.mxu0 0
        %831 = vmatpush1.bf16.xpose.msra.mxu0 0
        %832 = vmatprep.subr.bf16.mxu0 0
        %833 = vmatpush1.bf16.xpose.msra.mxu0 0
        %834 = vmatprep.subr.bf16.mxu0 0
        %835 = vmatpush1.bf16.xpose.msra.mxu0 0
        %836 = vmatprep.subr.bf16.mxu0 0
        %837 = vmatpush1.bf16.xpose.msra.mxu0 0
        %838 = vmatprep.mubr.bf16.mxu0 0
        %839 = vmatmul.mubr.bf16.gmra.mrb[0].mxu0 %v801
        %v840 = vpop.f32.mrb[0].mxu0
        %v841 = vadd.f32 0.0, %v840
        %v842 = vpop.f32.mrb[0].mxu0
        %v843 = vpop.f32.mrb[0].mxu0
        %v844 = vpop.f32.mrb[0].mxu0
        %845 = vdwg.mxu0
        %v846 = vld [vmem:[#allocation4 + $0x10] sm:$0xff]
        %v847 = vadd.f32 %v846, %v841
        %848 = vst.msk [vmem:[#allocation4 + $0x10] sm:$0xff] %vm445, %v847
        %v849 = vld [vmem:[%s661] sm:$0xff]
        %v850 = vmul.f32 %v849, %v687
        %v851 = vpack.c.bf16 %v850, %v850
        %s852 = scalar_lea.vmem %s321, 12 [#allocation10]
        %v853 = vld [vmem:[%s852] sm:$0xf]
        %v855 = vsel %vm445, %v853, 0
        %v858 = vsel %vm445, %v851, 0
        %860 = vmatprep.subr.bf16.mxu0 0
        %861 = vmatpush1.bf16.xpose.msra.mxu0 %v858
        %862 = vmatprep.subr.bf16.mxu0 0
        %863 = vmatpush1.bf16.xpose.msra.mxu0 0
        %864 = vmatprep.subr.bf16.mxu0 0
        %865 = vmatpush1.bf16.xpose.msra.mxu0 0
        %866 = vmatprep.subr.bf16.mxu0 0
        %867 = vmatpush1.bf16.xpose.msra.mxu0 0
        %868 = vmatprep.subr.bf16.mxu0 0
        %869 = vmatpush1.bf16.xpose.msra.mxu0 0
        %870 = vmatprep.subr.bf16.mxu0 0
        %871 = vmatpush1.bf16.xpose.msra.mxu0 0
        %872 = vmatprep.subr.bf16.mxu0 0
        %873 = vmatpush1.bf16.xpose.msra.mxu0 0
        %874 = vmatprep.subr.bf16.mxu0 0
        %875 = vmatpush1.bf16.xpose.msra.mxu0 0
        %876 = vmatprep.subr.bf16.mxu0 0
        %877 = vmatpush1.bf16.xpose.msra.mxu0 0
        %878 = vmatprep.subr.bf16.mxu0 0
        %879 = vmatpush1.bf16.xpose.msra.mxu0 0
        %880 = vmatprep.subr.bf16.mxu0 0
        %881 = vmatpush1.bf16.xpose.msra.mxu0 0
        %882 = vmatprep.subr.bf16.mxu0 0
        %883 = vmatpush1.bf16.xpose.msra.mxu0 0
        %884 = vmatprep.subr.bf16.mxu0 0
        %885 = vmatpush1.bf16.xpose.msra.mxu0 0
        %886 = vmatprep.subr.bf16.mxu0 0
        %887 = vmatpush1.bf16.xpose.msra.mxu0 0
        %888 = vmatprep.subr.bf16.mxu0 0
        %889 = vmatpush1.bf16.xpose.msra.mxu0 0
        %890 = vmatprep.subr.bf16.mxu0 0
        %891 = vmatpush1.bf16.xpose.msra.mxu0 0
        %892 = vmatprep.mubr.bf16.mxu0 0
        %893 = vmatmul.mubr.bf16.gmra.mrb[0].mxu0 %v855
        %v894 = vpop.f32.mrb[0].mxu0
        %v895 = vadd.f32 0.0, %v894
        %v896 = vpop.f32.mrb[0].mxu0
        %v897 = vpop.f32.mrb[0].mxu0
        %v898 = vpop.f32.mrb[0].mxu0
        %899 = vdwg.mxu0
        %v900 = vld [vmem:[#allocation4 + $0x18] sm:$0xff]
        %v901 = vadd.f32 %v900, %v895
        %902 = vst.msk [vmem:[#allocation4 + $0x18] sm:$0xff] %vm445, %v901
        // Predicated region
        $region61: #{tpu_custom_call.1} parent=39 // pred_check
          %p903 = pneg %p363
        $region62: #{tpu_custom_call.1} parent=39 // pred_check_branch
          %905 = sbr.rel (%p903) target = $region64
        $region63: #{tpu_custom_call.1} parent=39 // pred_region
          %v906 = vld [vmem:[#allocation4] sm:$0xff]
          %v907 = vld [vmem:[#allocation4 + $0x8] sm:$0xff]
          %v908 = vld [vmem:[#allocation4 + $0x10] sm:$0xff]
          %v909 = vld [vmem:[#allocation4 + $0x18] sm:$0xff]
          %910 = vxpose.xlu0.b32.start [1/16] %v906, 128
          %911 = vxpose.xlu0.b32.cont [2/16] %v907, 128
          %912 = vxpose.xlu0.b32.cont [3/16] %v908, 128
          %913 = vxpose.xlu0.b32.cont [4/16] %v909, 128
          %914 = vxpose.xlu0.b32.cont [5/16] 0.0, 128
          %915 = vxpose.xlu0.b32.cont [6/16] 0.0, 128
          %916 = vxpose.xlu0.b32.cont [7/16] 0.0, 128
          %917 = vxpose.xlu0.b32.cont [8/16] 0.0, 128
          %918 = vxpose.xlu0.b32.cont [9/16] 0.0, 128
          %919 = vxpose.xlu0.b32.cont [10/16] 0.0, 128
          %920 = vxpose.xlu0.b32.cont [11/16] 0.0, 128
          %921 = vxpose.xlu0.b32.cont [12/16] 0.0, 128
          %922 = vxpose.xlu0.b32.cont [13/16] 0.0, 128
          %923 = vxpose.xlu0.b32.cont [14/16] 0.0, 128
          %924 = vxpose.xlu0.b32.cont [15/16] 0.0, 128
          %925 = vxpose.xlu0.b32.end [16/16] 0.0, 128
          %v926 = vpop.trf.xlu0
          %v927 = vpop.trf.xlu0
          %v928 = vpop.trf.xlu0
          %v929 = vpop.trf.xlu0
          %v930 = vpop.trf.xlu0
          %v931 = vpop.trf.xlu0
          %v932 = vpop.trf.xlu0
          %v933 = vpop.trf.xlu0
          %v934 = vpop.trf.xlu0
          %v935 = vpop.trf.xlu0
          %v936 = vpop.trf.xlu0
          %v937 = vpop.trf.xlu0
          %v938 = vpop.trf.xlu0
          %v939 = vpop.trf.xlu0
          %v940 = vpop.trf.xlu0
          %v941 = vpop.trf.xlu0
          %vm942 = vcmask 261120
          %943 = vst.msk [vmem:[%s361] sm:$0xff] %vm942, %v926
        $region64: #{tpu_custom_call.1} parent=39 // pred_fallthru
          _
        %s944 = sand.u32 %s181, 1
        %s945 = scalar_lea.sflag [#allocation7], %s944
        %s946 = sand.u32 %s181, 1
        %s947 = smul.addr %s946, 8
        %s948 = scalar_lea.vmem [#allocation13], %s947
        // Predicated region
        $region65: #{tpu_custom_call.1} parent=39 // pred_check
          %p949 = pneg %p191
        $region66: #{tpu_custom_call.1} parent=39 // pred_check_branch
          %951 = sbr.rel (%p949) target = $region68
        $region67: #{tpu_custom_call.1} parent=39 // pred_region
          %s953 = ssub.s32 128, 128
          %954 = vsyncadd %s945, %s953
          %s955 = sadd.s32 %s32, %s31
          %s956 = smul.addr %s955, 128
          %s957 = scalar_lea.hbm %s5, %s956
          %s959 = sshll.u32 %s948, 4
          %s960 = int_to_ptr.vmem [resolvable:$true] %s959
          %962 = dma.vmem_to_hbm [thread:$0]  %s960, 128, %s957, %s945
        $region68: #{tpu_custom_call.1} parent=39 // pred_fallthru
          _
      $region40: #{tpu_custom_call.1} parent=5 // pred_fallthru
        _
      %p963 = scmp.le.s32.totalorder 2, %s21
      // Predicated region
      $region69: #{tpu_custom_call.1} parent=5 // pred_check
        %p964 = pneg %p963
      $region70: #{tpu_custom_call.1} parent=5 // pred_check_branch
        %966 = sbr.rel (%p964) target = $region72
      $region71: #{tpu_custom_call.1} parent=5 // pred_region
        %s967 = ssub.s32 %s21, 2
        // Predicated region
        $region73: #{tpu_custom_call.1} parent=71 // pred_check
          %p968 = pneg %p197
        $region74: #{tpu_custom_call.1} parent=71 // pred_check_branch
          %970 = sbr.rel (%p968) target = $region76
        $region75: #{tpu_custom_call.1} parent=71 // pred_region
          %s971 = sand.u32 %s182, 1
          %s972 = scalar_lea.sflag [#allocation7], %s971
          %s973 = sand.u32 %s182, 1
          %s974 = smul.addr %s973, 8
          %s975 = scalar_lea.vmem [#allocation13], %s974
          %976 = dma.done %s972, 128
        $region76: #{tpu_custom_call.1} parent=71 // pred_fallthru
          _
      $region72: #{tpu_custom_call.1} parent=5 // pred_fallthru
        _
    $region6: #{tpu_custom_call.1} parent=1 // loop_footer
      %s25 = sadd.s32 1, %s21
    $region7: #{tpu_custom_call.1} parent=1 // loop_footer_branch
      %20 = sbr.rel target = $region3
    $region8: #{tpu_custom_call.1} parent=1 // loop_exit
      _
    %977 = vsyncpa [#allocation6], 1
    %s978 = scalar_lea.sflag [#allocation6], 1
    %979 = vsyncpa %s978, 1
    %980 = vsyncpa [#allocation9], 1
    %s981 = scalar_lea.sflag [#allocation9], 1
    %982 = vsyncpa %s981, 1
    %983 = vsyncpa [#allocation12], 1
    %984 = vsyncpa [#allocation7], 1
    %s985 = scalar_lea.sflag [#allocation7], 1
    %986 = vsyncpa %s985, 1

</llo_original>
